<compile_context>
chip_gen: v7x
topology: tpu7x:2x2x1
jax: 0.10.0
libtpu: 0.0.40
codegen_flags: <defaults>
</compile_context>

<pallas_src>
import functools

import numpy as np

import jax
import jax.numpy as jnp
from jax.experimental import pallas as pl
from jax.experimental.pallas import tpu as pltpu


_VMEM = pl.BlockSpec(memory_space=pltpu.MemorySpace.VMEM)


# ----------------------------------------------------------------------------
# Kernel 1: fused Clip2Conv linear stack
#   y_{i+1} = LayerNorm(ReLU(y_i @ W_i + b_i)) * gamma_i + beta_i
# All layers run inside one kernel; weights are bf16 MXU operands, math in f32.
# ----------------------------------------------------------------------------
def fused_clip2conv_kernel(x_ref, *refs):
    o_ref = refs[-1]
    layer_refs = refs[:-1]
    nlayers = len(layer_refs) // 4
    y = x_ref[...]                                   # (B, emb_len) f32
    for i in range(nlayers):
        w_ref, b_ref, g_ref, beta_ref = layer_refs[4 * i:4 * i + 4]
        h = jnp.dot(y.astype(jnp.bfloat16), w_ref[...],     # bf16 x bf16 -> MXU
                    preferred_element_type=jnp.float32)
        h = h + b_ref[...]                           # (1, out) broadcasts
        h = jnp.maximum(h, 0.0)                      # ReLU (assumed)
        mean = jnp.mean(h, axis=-1, keepdims=True)
        var = jnp.mean(h * h, axis=-1, keepdims=True) - mean * mean  # biased
        y = (h - mean) * jax.lax.rsqrt(var + 1e-5) * g_ref[...] + beta_ref[...]
    o_ref[...] = y.astype(o_ref.dtype)


def pallas_clip2conv(x, layer_params):
    flat_inputs = [x]
    for (w, b, g, beta) in layer_params:
        flat_inputs += [w.astype(jnp.bfloat16), b, g, beta]
    out_dim = layer_params[-1][0].shape[1]
    return pl.pallas_call(
        fused_clip2conv_kernel,
        out_shape=jax.ShapeDtypeStruct((x.shape[0], out_dim), jnp.float32),
        in_specs=[_VMEM] * len(flat_inputs),
        out_specs=_VMEM,
        compiler_params=pltpu.CompilerParams(
            vmem_limit_bytes=32 * 1024 * 1024),
    )(*flat_inputs)


# ----------------------------------------------------------------------------
# Kernel 2: combine conv.  Conv2d(2C -> C, 3x3, padding=1) expressed as
# 9 shifted (roll + mask) matmuls over the flattened spatial axis.
#   out[co, i] = b[co] + sum_t mask_t[i] * sum_ci W_t[co, ci] * x[ci, i + s_t]
# prev-half and c2c-half of the input channels are kept as separate inputs
# (no HBM concat); the weight is split accordingly.
# ----------------------------------------------------------------------------
def conv3x3_kernel(mask_ref, prev_ref, c2c_ref, wp_ref, wo_ref, b_ref, o_ref,
                   *, width):
    hw = prev_ref.shape[-1]
    prev = prev_ref[0]                               # (C, HW) f32
    c2c = c2c_ref[0]                                 # (C, HW) f32
    cout_p = wp_ref.shape[1]
    acc = jnp.zeros((cout_p, hw), jnp.float32)
    t = 0
    for dh in (-1, 0, 1):
        for dw in (-1, 0, 1):
            s = dh * width + dw                      # flattened spatial shift
            if s == 0:
                xp, xo = prev, c2c
            else:
                shift = (-s) % hw                    # result[i] = x[i + s]
                xp = pltpu.roll(prev, shift, axis=1)
                xo = pltpu.roll(c2c, shift, axis=1)
            contrib = (
                jnp.dot(wp_ref[t], xp.astype(jnp.bfloat16),
                        preferred_element_type=jnp.float32)
                + jnp.dot(wo_ref[t], xo.astype(jnp.bfloat16),
                          preferred_element_type=jnp.float32))
            acc = acc + contrib * mask_ref[t]        # zero the wrapped border
            t += 1
    o_ref[0] = (acc + b_ref[...]).astype(o_ref.dtype)


def _border_masks(H, W):
    """(9, 1, H*W) f32 masks: 1 where the shifted tap stays inside the image."""
    hw = H * W
    hh, ww = np.divmod(np.arange(hw), W)
    m = np.zeros((9, 1, hw), np.float32)
    t = 0
    for dh in (-1, 0, 1):
        for dw in (-1, 0, 1):
            ok = (hh + dh >= 0) & (hh + dh < H) & (ww + dw >= 0) & (ww + dw < W)
            m[t, 0, :] = ok.astype(np.float32)
            t += 1
    return m


def pallas_conv3x3(prev_nchw, c2c_nchw, w_oihw, bias):
    """3x3 conv, stride 1, padding 1.  Inputs NCHW, output NCHW."""
    B, C, H, W = prev_nchw.shape
    Cout, Cin2 = w_oihw.shape[0], w_oihw.shape[1]    # Cin2 == 2*C
    HW = H * W
    Cout_p = ((Cout + 7) // 8) * 8                   # sublane-aligned accumulator

    prev3 = prev_nchw.reshape(B, C, HW)              # free (contiguous)
    c2c3 = c2c_nchw.reshape(B, C, HW)                # free (contiguous)

    # (Cout, 2C, 3, 3) -> (9, Cout_p, 2C) in tap order t = kh*3 + kw, bf16.
    w9 = w_oihw.transpose(2, 3, 0, 1).reshape(9, Cout, Cin2)
    w9 = jnp.pad(w9, ((0, 0), (0, Cout_p - Cout), (0, 0))).astype(jnp.bfloat16)
    wp = w9[:, :, :C]                                # prev_layer channels
    wo = w9[:, :, C:]                                # clip2conv channels
    b2 = jnp.pad(bias.reshape(Cout, 1), ((0, Cout_p - Cout), (0, 0)))
    masks = jnp.asarray(_border_masks(H, W))

    out3 = pl.pallas_call(
        functools.partial(conv3x3_kernel, width=W),
        out_shape=jax.ShapeDtypeStruct((B, Cout_p, HW), jnp.float32),
        grid=(B,),
        in_specs=[
            pl.BlockSpec((9, 1, HW), lambda b: (0, 0, 0)),
            pl.BlockSpec((1, C, HW), lambda b: (b, 0, 0)),
            pl.BlockSpec((1, C, HW), lambda b: (b, 0, 0)),
            pl.BlockSpec((9, Cout_p, C), lambda b: (0, 0, 0)),
            pl.BlockSpec((9, Cout_p, C), lambda b: (0, 0, 0)),
            pl.BlockSpec((Cout_p, 1), lambda b: (0, 0)),
        ],
        out_specs=pl.BlockSpec((1, Cout_p, HW), lambda b: (b, 0, 0)),
        compiler_params=pltpu.CompilerParams(
            dimension_semantics=("parallel",),
            vmem_limit_bytes=32 * 1024 * 1024),
    )(masks, prev3, c2c3, wp, wo, b2)

    return out3[:, :Cout, :].reshape(B, Cout, H, W)


# ----------------------------------------------------------------------------
# ConvLayer forward
# ----------------------------------------------------------------------------
@functools.partial(jax.jit, static_argnames=("in_chan", "in_size", "do_combine"))
def conv_layer_forward(prev_layer, clip_embed, params, *, in_chan, in_size,
                       do_combine):
    # --- Clip2Conv: fused linear stack + unflatten (free reshape) ---
    flat = pallas_clip2conv(clip_embed, params["linear"])
    B = clip_embed.shape[0]
    out = flat.reshape(B, in_chan, in_size, in_size)

    # --- combine: fused concat + 3x3 conv ---
    if do_combine:
        out = pallas_conv3x3(prev_layer, out, params["conv_w"], params["conv_b"])

    # --- upres ---
    # TODO(synk): UpResBlock not defined in the provided source; identity here.
    return out


# ----------------------------------------------------------------------------
# Reference (mirrors the kernel's bf16-operand / f32-accumulate precision)
# ----------------------------------------------------------------------------
def reference_forward(prev_layer, clip_embed, params, *, in_chan, in_size,
                      do_combine):
    y = clip_embed
    for (w, b, g, beta) in params["linear"]:
        h = jnp.dot(y.astype(jnp.bfloat16), w.astype(jnp.bfloat16),
                    preferred_element_type=jnp.float32) + b[0]
        h = jnp.maximum(h, 0.0)
        mean = h.mean(-1, keepdims=True)
        var = ((h - mean) ** 2).mean(-1, keepdims=True)
        y = (h - mean) / jnp.sqrt(var + 1e-5) * g[0] + beta[0]
    B = clip_embed.shape[0]
    out = y.reshape(B, in_chan, in_size, in_size)
    if do_combine:
        xin = jnp.concatenate([prev_layer, out], axis=1)
        out = jax.lax.conv_general_dilated(
            xin.astype(jnp.bfloat16), params["conv_w"].astype(jnp.bfloat16),
            window_strides=(1, 1), padding="SAME",
            dimension_numbers=("NCHW", "OIHW", "NCHW"),
            preferred_element_type=jnp.float32,
        ) + params["conv_b"].reshape(1, -1, 1, 1)
    return out


# ----------------------------------------------------------------------------
# Main
# ----------------------------------------------------------------------------
if __name__ == "__main__":
    B = 2
    EMB_LEN = 32
    IN_CHAN = 4
    IN_SIZE = 16
    NLINEAR = 2
    HIDLEN = 64
    DO_COMBINE = True
    FLAT_LEN = IN_CHAN * IN_SIZE * IN_SIZE   # 1024

    key = jax.random.PRNGKey(0)
    keys = iter(jax.random.split(key, 32))

    # Clip2Conv linear stack parameters.
    linear_params = []
    lin_in = EMB_LEN
    for i in range(NLINEAR):
        lin_out = FLAT_LEN if i == NLINEAR - 1 else HIDLEN
        w = 0.05 * jax.random.normal(next(keys), (lin_in, lin_out), jnp.float32)
        b = 0.01 * jax.random.normal(next(keys), (1, lin_out), jnp.float32)
        gamma = jnp.ones((1, lin_out), jnp.float32) \
            + 0.1 * jax.random.normal(next(keys), (1, lin_out), jnp.float32)
        beta = 0.1 * jax.random.normal(next(keys), (1, lin_out), jnp.float32)
        linear_params.append((w, b, gamma, beta))
        lin_in = lin_out

    # Combine conv: Conv2d(in_chan*2 -> in_chan, kernel_size=3, padding=1).
    conv_w = 0.05 * jax.random.normal(
        next(keys), (IN_CHAN, IN_CHAN * 2, 3, 3), jnp.float32)
    conv_b = 0.01 * jax.random.normal(next(keys), (IN_CHAN,), jnp.float32)

    params = {"linear": tuple(linear_params), "conv_w": conv_w, "conv_b": conv_b}

    prev_layer = jax.random.normal(next(keys), (B, IN_CHAN, IN_SIZE, IN_SIZE),
                                   jnp.float32)
    clip_embed = jax.random.normal(next(keys), (B, EMB_LEN), jnp.float32)

    out = conv_layer_forward(prev_layer, clip_embed, params,
                             in_chan=IN_CHAN, in_size=IN_SIZE,
                             do_combine=DO_COMBINE)
    out = jax.block_until_ready(out)

    ref = reference_forward(prev_layer, clip_embed, params,
                            in_chan=IN_CHAN, in_size=IN_SIZE,
                            do_combine=DO_COMBINE)
    ref = jax.block_until_ready(ref)

    assert out.shape == (B, IN_CHAN, IN_SIZE, IN_SIZE), out.shape
    max_err = float(jnp.max(jnp.abs(out - ref)))
    assert jnp.allclose(out, ref, atol=1e-2, rtol=1e-2), max_err

    print("KERNEL_OK")
</pallas_src>

<mosaic_0001>
module attributes {stable_mosaic.version = 11 : i64} {
  func.func @fused_clip2conv_kernel(%arg0: memref<2x32xf32, #tpu.memory_space<vmem>>, %arg1: memref<32x64xbf16, #tpu.memory_space<vmem>>, %arg2: memref<1x64xf32, #tpu.memory_space<vmem>>, %arg3: memref<1x64xf32, #tpu.memory_space<vmem>>, %arg4: memref<1x64xf32, #tpu.memory_space<vmem>>, %arg5: memref<64x1024xbf16, #tpu.memory_space<vmem>>, %arg6: memref<1x1024xf32, #tpu.memory_space<vmem>>, %arg7: memref<1x1024xf32, #tpu.memory_space<vmem>>, %arg8: memref<1x1024xf32, #tpu.memory_space<vmem>>, %arg9: memref<2x1024xf32, #tpu.memory_space<vmem>>) attributes {dimension_semantics = [], scalar_prefetch = 0 : i64, scratch_operands = 0 : i64, tpu.core_type = #tpu.core_type<tc>} {
    %c0 = arith.constant 0 : index
    %c0_0 = arith.constant 0 : index
    %0 = vector.load %arg0[%c0, %c0_0] : memref<2x32xf32, #tpu.memory_space<vmem>>, vector<2x32xf32>
    %1 = arith.truncf %0 : vector<2x32xf32> to vector<2x32xbf16>
    %c0_1 = arith.constant 0 : index
    %c0_2 = arith.constant 0 : index
    %2 = vector.load %arg1[%c0_1, %c0_2] : memref<32x64xbf16, #tpu.memory_space<vmem>>, vector<32x64xbf16>
    %cst = arith.constant dense<0.000000e+00> : vector<2x64xf32>
    %3 = tpu.matmul %1, %2, %cst {dimension_numbers = #tpu.dot_dimension_numbers<[1], [0], [0], [1], [0, 0, 1, 1], [], []>} : vector<2x32xbf16>, vector<32x64xbf16>, vector<2x64xf32> -> vector<2x64xf32>
    %c0_3 = arith.constant 0 : index
    %c0_4 = arith.constant 0 : index
    %4 = vector.load %arg2[%c0_3, %c0_4] : memref<1x64xf32, #tpu.memory_space<vmem>>, vector<1x64xf32>
    %5 = vector.broadcast %4 : vector<1x64xf32> to vector<2x64xf32>
    %6 = arith.addf %3, %5 : vector<2x64xf32>
    %cst_5 = arith.constant 0.000000e+00 : f32
    %7 = vector.broadcast %cst_5 : f32 to vector<2x64xf32>
    %8 = arith.maximumf %6, %7 : vector<2x64xf32>
    %cst_6 = arith.constant dense<0.000000e+00> : vector<2xf32>
    %9 = vector.multi_reduction <add>, %8, %cst_6 [1] : vector<2x64xf32> to vector<2xf32>
    %10 = vector.shape_cast %9 : vector<2xf32> to vector<2x1xf32>
    %cst_7 = arith.constant 6.400000e+01 : f32
    %11 = vector.broadcast %cst_7 : f32 to vector<2x1xf32>
    %12 = arith.divf %10, %11 : vector<2x1xf32>
    %13 = arith.mulf %8, %8 : vector<2x64xf32>
    %cst_8 = arith.constant dense<0.000000e+00> : vector<2xf32>
    %14 = vector.multi_reduction <add>, %13, %cst_8 [1] : vector<2x64xf32> to vector<2xf32>
    %15 = vector.shape_cast %14 : vector<2xf32> to vector<2x1xf32>
    %cst_9 = arith.constant 6.400000e+01 : f32
    %16 = vector.broadcast %cst_9 : f32 to vector<2x1xf32>
    %17 = arith.divf %15, %16 : vector<2x1xf32>
    %18 = arith.mulf %12, %12 : vector<2x1xf32>
    %19 = arith.subf %17, %18 : vector<2x1xf32>
    %20 = vector.broadcast %12 : vector<2x1xf32> to vector<2x64xf32>
    %21 = arith.subf %8, %20 : vector<2x64xf32>
    %cst_10 = arith.constant 9.99999974E-6 : f32
    %22 = vector.broadcast %cst_10 : f32 to vector<2x1xf32>
    %23 = arith.addf %19, %22 : vector<2x1xf32>
    %24 = math.rsqrt %23 : vector<2x1xf32>
    %25 = vector.broadcast %24 : vector<2x1xf32> to vector<2x64xf32>
    %26 = arith.mulf %21, %25 : vector<2x64xf32>
    %c0_11 = arith.constant 0 : index
    %c0_12 = arith.constant 0 : index
    %27 = vector.load %arg3[%c0_11, %c0_12] : memref<1x64xf32, #tpu.memory_space<vmem>>, vector<1x64xf32>
    %28 = vector.broadcast %27 : vector<1x64xf32> to vector<2x64xf32>
    %29 = arith.mulf %26, %28 : vector<2x64xf32>
    %c0_13 = arith.constant 0 : index
    %c0_14 = arith.constant 0 : index
    %30 = vector.load %arg4[%c0_13, %c0_14] : memref<1x64xf32, #tpu.memory_space<vmem>>, vector<1x64xf32>
    %31 = vector.broadcast %30 : vector<1x64xf32> to vector<2x64xf32>
    %32 = arith.addf %29, %31 : vector<2x64xf32>
    %33 = arith.truncf %32 : vector<2x64xf32> to vector<2x64xbf16>
    %c0_15 = arith.constant 0 : index
    %c0_16 = arith.constant 0 : index
    %34 = vector.load %arg5[%c0_15, %c0_16] : memref<64x1024xbf16, #tpu.memory_space<vmem>>, vector<64x1024xbf16>
    %cst_17 = arith.constant dense<0.000000e+00> : vector<2x1024xf32>
    %35 = tpu.matmul %33, %34, %cst_17 {dimension_numbers = #tpu.dot_dimension_numbers<[1], [0], [0], [1], [0, 0, 1, 1], [], []>} : vector<2x64xbf16>, vector<64x1024xbf16>, vector<2x1024xf32> -> vector<2x1024xf32>
    %c0_18 = arith.constant 0 : index
    %c0_19 = arith.constant 0 : index
    %36 = vector.load %arg6[%c0_18, %c0_19] : memref<1x1024xf32, #tpu.memory_space<vmem>>, vector<1x1024xf32>
    %37 = vector.broadcast %36 : vector<1x1024xf32> to vector<2x1024xf32>
    %38 = arith.addf %35, %37 : vector<2x1024xf32>
    %cst_20 = arith.constant 0.000000e+00 : f32
    %39 = vector.broadcast %cst_20 : f32 to vector<2x1024xf32>
    %40 = arith.maximumf %38, %39 : vector<2x1024xf32>
    %cst_21 = arith.constant dense<0.000000e+00> : vector<2xf32>
    %41 = vector.multi_reduction <add>, %40, %cst_21 [1] : vector<2x1024xf32> to vector<2xf32>
    %42 = vector.shape_cast %41 : vector<2xf32> to vector<2x1xf32>
    %cst_22 = arith.constant 1.024000e+03 : f32
    %43 = vector.broadcast %cst_22 : f32 to vector<2x1xf32>
    %44 = arith.divf %42, %43 : vector<2x1xf32>
    %45 = arith.mulf %40, %40 : vector<2x1024xf32>
    %cst_23 = arith.constant dense<0.000000e+00> : vector<2xf32>
    %46 = vector.multi_reduction <add>, %45, %cst_23 [1] : vector<2x1024xf32> to vector<2xf32>
    %47 = vector.shape_cast %46 : vector<2xf32> to vector<2x1xf32>
    %cst_24 = arith.constant 1.024000e+03 : f32
    %48 = vector.broadcast %cst_24 : f32 to vector<2x1xf32>
    %49 = arith.divf %47, %48 : vector<2x1xf32>
    %50 = arith.mulf %44, %44 : vector<2x1xf32>
    %51 = arith.subf %49, %50 : vector<2x1xf32>
    %52 = vector.broadcast %44 : vector<2x1xf32> to vector<2x1024xf32>
    %53 = arith.subf %40, %52 : vector<2x1024xf32>
    %cst_25 = arith.constant 9.99999974E-6 : f32
    %54 = vector.broadcast %cst_25 : f32 to vector<2x1xf32>
    %55 = arith.addf %51, %54 : vector<2x1xf32>
    %56 = math.rsqrt %55 : vector<2x1xf32>
    %57 = vector.broadcast %56 : vector<2x1xf32> to vector<2x1024xf32>
    %58 = arith.mulf %53, %57 : vector<2x1024xf32>
    %c0_26 = arith.constant 0 : index
    %c0_27 = arith.constant 0 : index
    %59 = vector.load %arg7[%c0_26, %c0_27] : memref<1x1024xf32, #tpu.memory_space<vmem>>, vector<1x1024xf32>
    %60 = vector.broadcast %59 : vector<1x1024xf32> to vector<2x1024xf32>
    %61 = arith.mulf %58, %60 : vector<2x1024xf32>
    %c0_28 = arith.constant 0 : index
    %c0_29 = arith.constant 0 : index
    %62 = vector.load %arg8[%c0_28, %c0_29] : memref<1x1024xf32, #tpu.memory_space<vmem>>, vector<1x1024xf32>
    %63 = vector.broadcast %62 : vector<1x1024xf32> to vector<2x1024xf32>
    %64 = arith.addf %61, %63 : vector<2x1024xf32>
    %c0_30 = arith.constant 0 : index
    %c0_31 = arith.constant 0 : index
    %65 = vector.load %arg9[%c0_30, %c0_31] : memref<2x1024xf32, #tpu.memory_space<vmem>>, vector<2x1024xf32>
    tpu.vector_store %arg9[%c0_30, %c0_31], %64 {strides = array<i32>} : memref<2x1024xf32, #tpu.memory_space<vmem>>, vector<2x1024xf32>,
    return
  }
}

module attributes {stable_mosaic.version = 11 : i64} {
  func.func @conv3x3_kernel(%arg0: i32, %arg1: memref<9x1x256xf32, #tpu.memory_space<vmem>>, %arg2: memref<1x4x256xf32, #tpu.memory_space<vmem>>, %arg3: memref<1x4x256xf32, #tpu.memory_space<vmem>>, %arg4: memref<9x8x4xbf16, #tpu.memory_space<vmem>>, %arg5: memref<9x8x4xbf16, #tpu.memory_space<vmem>>, %arg6: memref<8x1xf32, #tpu.memory_space<vmem>>, %arg7: memref<1x8x256xf32, #tpu.memory_space<vmem>>) attributes {dimension_semantics = [#tpu.dimension_semantics<parallel>], iteration_bounds = array<i64: 2>, scalar_prefetch = 0 : i64, scratch_operands = 0 : i64, tpu.core_type = #tpu.core_type<tc>, window_params = [{pipeline_mode = #tpu.pipeline_mode<synchronous>, transform_indices = @transform_0, window_bounds = array<i64: 9, 1, 256>}, {transform_indices = @transform_1, window_bounds = array<i64: 1, 4, 256>}, {transform_indices = @transform_2, window_bounds = array<i64: 1, 4, 256>}, {pipeline_mode = #tpu.pipeline_mode<synchronous>, transform_indices = @transform_3, window_bounds = array<i64: 9, 8, 4>}, {pipeline_mode = #tpu.pipeline_mode<synchronous>, transform_indices = @transform_4, window_bounds = array<i64: 9, 8, 4>}, {pipeline_mode = #tpu.pipeline_mode<synchronous>, transform_indices = @transform_5, window_bounds = array<i64: 8, 1>}, {transform_indices = @transform_6, window_bounds = array<i64: 1, 8, 256>}]} {
    %c0 = arith.constant 0 : index
    %c0_0 = arith.constant 0 : index
    %c0_1 = arith.constant 0 : index
    %0 = vector.load %arg2[%c0, %c0_0, %c0_1] : memref<1x4x256xf32, #tpu.memory_space<vmem>>, vector<1x4x256xf32>
    %1 = vector.shape_cast %0 : vector<1x4x256xf32> to vector<4x256xf32>
    %c0_2 = arith.constant 0 : index
    %c0_3 = arith.constant 0 : index
    %c0_4 = arith.constant 0 : index
    %2 = vector.load %arg3[%c0_2, %c0_3, %c0_4] : memref<1x4x256xf32, #tpu.memory_space<vmem>>, vector<1x4x256xf32>
    %3 = vector.shape_cast %2 : vector<1x4x256xf32> to vector<4x256xf32>
    %cst = arith.constant 0.000000e+00 : f32
    %4 = vector.broadcast %cst : f32 to vector<8x256xf32>
    %c17_i32 = arith.constant 17 : i32
    %5 = tpu.dynamic_rotate %1 by %c17_i32 dim 1 : vector<4x256xf32>, i32 -> vector<4x256xf32>
    %c17_i32_5 = arith.constant 17 : i32
    %6 = tpu.dynamic_rotate %3 by %c17_i32_5 dim 1 : vector<4x256xf32>, i32 -> vector<4x256xf32>
    %c0_6 = arith.constant 0 : index
    %c0_7 = arith.constant 0 : index
    %c0_8 = arith.constant 0 : index
    %7 = vector.load %arg4[%c0_6, %c0_7, %c0_8] : memref<9x8x4xbf16, #tpu.memory_space<vmem>>, vector<1x8x4xbf16>
    %8 = vector.shape_cast %7 : vector<1x8x4xbf16> to vector<8x4xbf16>
    %9 = arith.truncf %5 : vector<4x256xf32> to vector<4x256xbf16>
    %cst_9 = arith.constant dense<0.000000e+00> : vector<8x256xf32>
    %10 = tpu.matmul %8, %9, %cst_9 {dimension_numbers = #tpu.dot_dimension_numbers<[1], [0], [0], [1], [0, 0, 1, 1], [], []>} : vector<8x4xbf16>, vector<4x256xbf16>, vector<8x256xf32> -> vector<8x256xf32>
    %c0_10 = arith.constant 0 : index
    %c0_11 = arith.constant 0 : index
    %c0_12 = arith.constant 0 : index
    %11 = vector.load %arg5[%c0_10, %c0_11, %c0_12] : memref<9x8x4xbf16, #tpu.memory_space<vmem>>, vector<1x8x4xbf16>
    %12 = vector.shape_cast %11 : vector<1x8x4xbf16> to vector<8x4xbf16>
    %13 = arith.truncf %6 : vector<4x256xf32> to vector<4x256xbf16>
    %cst_13 = arith.constant dense<0.000000e+00> : vector<8x256xf32>
    %14 = tpu.matmul %12, %13, %cst_13 {dimension_numbers = #tpu.dot_dimension_numbers<[1], [0], [0], [1], [0, 0, 1, 1], [], []>} : vector<8x4xbf16>, vector<4x256xbf16>, vector<8x256xf32> -> vector<8x256xf32>
    %15 = arith.addf %10, %14 : vector<8x256xf32>
    %c0_14 = arith.constant 0 : index
    %c0_15 = arith.constant 0 : index
    %c0_16 = arith.constant 0 : index
    %16 = vector.load %arg1[%c0_14, %c0_15, %c0_16] : memref<9x1x256xf32, #tpu.memory_space<vmem>>, vector<1x1x256xf32>
    %17 = vector.shape_cast %16 : vector<1x1x256xf32> to vector<1x256xf32>
    %18 = vector.broadcast %17 : vector<1x256xf32> to vector<8x256xf32>
    %19 = arith.mulf %15, %18 : vector<8x256xf32>
    %20 = arith.addf %4, %19 : vector<8x256xf32>
    %c16_i32 = arith.constant 16 : i32
    %21 = tpu.dynamic_rotate %1 by %c16_i32 dim 1 : vector<4x256xf32>, i32 -> vector<4x256xf32>
    %c16_i32_17 = arith.constant 16 : i32
    %22 = tpu.dynamic_rotate %3 by %c16_i32_17 dim 1 : vector<4x256xf32>, i32 -> vector<4x256xf32>
    %c1 = arith.constant 1 : index
    %c0_18 = arith.constant 0 : index
    %c0_19 = arith.constant 0 : index
    %23 = vector.load %arg4[%c1, %c0_18, %c0_19] : memref<9x8x4xbf16, #tpu.memory_space<vmem>>, vector<1x8x4xbf16>
    %24 = vector.shape_cast %23 : vector<1x8x4xbf16> to vector<8x4xbf16>
    %25 = arith.truncf %21 : vector<4x256xf32> to vector<4x256xbf16>
    %cst_20 = arith.constant dense<0.000000e+00> : vector<8x256xf32>
    %26 = tpu.matmul %24, %25, %cst_20 {dimension_numbers = #tpu.dot_dimension_numbers<[1], [0], [0], [1], [0, 0, 1, 1], [], []>} : vector<8x4xbf16>, vector<4x256xbf16>, vector<8x256xf32> -> vector<8x256xf32>
    %c1_21 = arith.constant 1 : index
    %c0_22 = arith.constant 0 : index
    %c0_23 = arith.constant 0 : index
    %27 = vector.load %arg5[%c1_21, %c0_22, %c0_23] : memref<9x8x4xbf16, #tpu.memory_space<vmem>>, vector<1x8x4xbf16>
    %28 = vector.shape_cast %27 : vector<1x8x4xbf16> to vector<8x4xbf16>
    %29 = arith.truncf %22 : vector<4x256xf32> to vector<4x256xbf16>
    %cst_24 = arith.constant dense<0.000000e+00> : vector<8x256xf32>
    %30 = tpu.matmul %28, %29, %cst_24 {dimension_numbers = #tpu.dot_dimension_numbers<[1], [0], [0], [1], [0, 0, 1, 1], [], []>} : vector<8x4xbf16>, vector<4x256xbf16>, vector<8x256xf32> -> vector<8x256xf32>
    %31 = arith.addf %26, %30 : vector<8x256xf32>
    %c1_25 = arith.constant 1 : index
    %c0_26 = arith.constant 0 : index
    %c0_27 = arith.constant 0 : index
    %32 = vector.load %arg1[%c1_25, %c0_26, %c0_27] : memref<9x1x256xf32, #tpu.memory_space<vmem>>, vector<1x1x256xf32>
    %33 = vector.shape_cast %32 : vector<1x1x256xf32> to vector<1x256xf32>
    %34 = vector.broadcast %33 : vector<1x256xf32> to vector<8x256xf32>
    %35 = arith.mulf %31, %34 : vector<8x256xf32>
    %36 = arith.addf %20, %35 : vector<8x256xf32>
    %c15_i32 = arith.constant 15 : i32
    %37 = tpu.dynamic_rotate %1 by %c15_i32 dim 1 : vector<4x256xf32>, i32 -> vector<4x256xf32>
    %c15_i32_28 = arith.constant 15 : i32
    %38 = tpu.dynamic_rotate %3 by %c15_i32_28 dim 1 : vector<4x256xf32>, i32 -> vector<4x256xf32>
    %c2 = arith.constant 2 : index
    %c0_29 = arith.constant 0 : index
    %c0_30 = arith.constant 0 : index
    %39 = vector.load %arg4[%c2, %c0_29, %c0_30] : memref<9x8x4xbf16, #tpu.memory_space<vmem>>, vector<1x8x4xbf16>
    %40 = vector.shape_cast %39 : vector<1x8x4xbf16> to vector<8x4xbf16>
    %41 = arith.truncf %37 : vector<4x256xf32> to vector<4x256xbf16>
    %cst_31 = arith.constant dense<0.000000e+00> : vector<8x256xf32>
    %42 = tpu.matmul %40, %41, %cst_31 {dimension_numbers = #tpu.dot_dimension_numbers<[1], [0], [0], [1], [0, 0, 1, 1], [], []>} : vector<8x4xbf16>, vector<4x256xbf16>, vector<8x256xf32> -> vector<8x256xf32>
    %c2_32 = arith.constant 2 : index
    %c0_33 = arith.constant 0 : index
    %c0_34 = arith.constant 0 : index
    %43 = vector.load %arg5[%c2_32, %c0_33, %c0_34] : memref<9x8x4xbf16, #tpu.memory_space<vmem>>, vector<1x8x4xbf16>
    %44 = vector.shape_cast %43 : vector<1x8x4xbf16> to vector<8x4xbf16>
    %45 = arith.truncf %38 : vector<4x256xf32> to vector<4x256xbf16>
    %cst_35 = arith.constant dense<0.000000e+00> : vector<8x256xf32>
    %46 = tpu.matmul %44, %45, %cst_35 {dimension_numbers = #tpu.dot_dimension_numbers<[1], [0], [0], [1], [0, 0, 1, 1], [], []>} : vector<8x4xbf16>, vector<4x256xbf16>, vector<8x256xf32> -> vector<8x256xf32>
    %47 = arith.addf %42, %46 : vector<8x256xf32>
    %c2_36 = arith.constant 2 : index
    %c0_37 = arith.constant 0 : index
    %c0_38 = arith.constant 0 : index
    %48 = vector.load %arg1[%c2_36, %c0_37, %c0_38] : memref<9x1x256xf32, #tpu.memory_space<vmem>>, vector<1x1x256xf32>
    %49 = vector.shape_cast %48 : vector<1x1x256xf32> to vector<1x256xf32>
    %50 = vector.broadcast %49 : vector<1x256xf32> to vector<8x256xf32>
    %51 = arith.mulf %47, %50 : vector<8x256xf32>
    %52 = arith.addf %36, %51 : vector<8x256xf32>
    %c1_i32 = arith.constant 1 : i32
    %53 = tpu.dynamic_rotate %1 by %c1_i32 dim 1 : vector<4x256xf32>, i32 -> vector<4x256xf32>
    %c1_i32_39 = arith.constant 1 : i32
    %54 = tpu.dynamic_rotate %3 by %c1_i32_39 dim 1 : vector<4x256xf32>, i32 -> vector<4x256xf32>
    %c3 = arith.constant 3 : index
    %c0_40 = arith.constant 0 : index
    %c0_41 = arith.constant 0 : index
    %55 = vector.load %arg4[%c3, %c0_40, %c0_41] : memref<9x8x4xbf16, #tpu.memory_space<vmem>>, vector<1x8x4xbf16>
    %56 = vector.shape_cast %55 : vector<1x8x4xbf16> to vector<8x4xbf16>
    %57 = arith.truncf %53 : vector<4x256xf32> to vector<4x256xbf16>
    %cst_42 = arith.constant dense<0.000000e+00> : vector<8x256xf32>
    %58 = tpu.matmul %56, %57, %cst_42 {dimension_numbers = #tpu.dot_dimension_numbers<[1], [0], [0], [1], [0, 0, 1, 1], [], []>} : vector<8x4xbf16>, vector<4x256xbf16>, vector<8x256xf32> -> vector<8x256xf32>
    %c3_43 = arith.constant 3 : index
    %c0_44 = arith.constant 0 : index
    %c0_45 = arith.constant 0 : index
    %59 = vector.load %arg5[%c3_43, %c0_44, %c0_45] : memref<9x8x4xbf16, #tpu.memory_space<vmem>>, vector<1x8x4xbf16>
    %60 = vector.shape_cast %59 : vector<1x8x4xbf16> to vector<8x4xbf16>
    %61 = arith.truncf %54 : vector<4x256xf32> to vector<4x256xbf16>
    %cst_46 = arith.constant dense<0.000000e+00> : vector<8x256xf32>
    %62 = tpu.matmul %60, %61, %cst_46 {dimension_numbers = #tpu.dot_dimension_numbers<[1], [0], [0], [1], [0, 0, 1, 1], [], []>} : vector<8x4xbf16>, vector<4x256xbf16>, vector<8x256xf32> -> vector<8x256xf32>
    %63 = arith.addf %58, %62 : vector<8x256xf32>
    %c3_47 = arith.constant 3 : index
    %c0_48 = arith.constant 0 : index
    %c0_49 = arith.constant 0 : index
    %64 = vector.load %arg1[%c3_47, %c0_48, %c0_49] : memref<9x1x256xf32, #tpu.memory_space<vmem>>, vector<1x1x256xf32>
    %65 = vector.shape_cast %64 : vector<1x1x256xf32> to vector<1x256xf32>
    %66 = vector.broadcast %65 : vector<1x256xf32> to vector<8x256xf32>
    %67 = arith.mulf %63, %66 : vector<8x256xf32>
    %68 = arith.addf %52, %67 : vector<8x256xf32>
    %c4 = arith.constant 4 : index
    %c0_50 = arith.constant 0 : index
    %c0_51 = arith.constant 0 : index
    %69 = vector.load %arg4[%c4, %c0_50, %c0_51] : memref<9x8x4xbf16, #tpu.memory_space<vmem>>, vector<1x8x4xbf16>
    %70 = vector.shape_cast %69 : vector<1x8x4xbf16> to vector<8x4xbf16>
    %71 = arith.truncf %1 : vector<4x256xf32> to vector<4x256xbf16>
    %cst_52 = arith.constant dense<0.000000e+00> : vector<8x256xf32>
    %72 = tpu.matmul %70, %71, %cst_52 {dimension_numbers = #tpu.dot_dimension_numbers<[1], [0], [0], [1], [0, 0, 1, 1], [], []>} : vector<8x4xbf16>, vector<4x256xbf16>, vector<8x256xf32> -> vector<8x256xf32>
    %c4_53 = arith.constant 4 : index
    %c0_54 = arith.constant 0 : index
    %c0_55 = arith.constant 0 : index
    %73 = vector.load %arg5[%c4_53, %c0_54, %c0_55] : memref<9x8x4xbf16, #tpu.memory_space<vmem>>, vector<1x8x4xbf16>
    %74 = vector.shape_cast %73 : vector<1x8x4xbf16> to vector<8x4xbf16>
    %75 = arith.truncf %3 : vector<4x256xf32> to vector<4x256xbf16>
    %cst_56 = arith.constant dense<0.000000e+00> : vector<8x256xf32>
    %76 = tpu.matmul %74, %75, %cst_56 {dimension_numbers = #tpu.dot_dimension_numbers<[1], [0], [0], [1], [0, 0, 1, 1], [], []>} : vector<8x4xbf16>, vector<4x256xbf16>, vector<8x256xf32> -> vector<8x256xf32>
    %77 = arith.addf %72, %76 : vector<8x256xf32>
    %c4_57 = arith.constant 4 : index
    %c0_58 = arith.constant 0 : index
    %c0_59 = arith.constant 0 : index
    %78 = vector.load %arg1[%c4_57, %c0_58, %c0_59] : memref<9x1x256xf32, #tpu.memory_space<vmem>>, vector<1x1x256xf32>
    %79 = vector.shape_cast %78 : vector<1x1x256xf32> to vector<1x256xf32>
    %80 = vector.broadcast %79 : vector<1x256xf32> to vector<8x256xf32>
    %81 = arith.mulf %77, %80 : vector<8x256xf32>
    %82 = arith.addf %68, %81 : vector<8x256xf32>
    %c255_i32 = arith.constant 255 : i32
    %83 = tpu.dynamic_rotate %1 by %c255_i32 dim 1 : vector<4x256xf32>, i32 -> vector<4x256xf32>
    %c255_i32_60 = arith.constant 255 : i32
    %84 = tpu.dynamic_rotate %3 by %c255_i32_60 dim 1 : vector<4x256xf32>, i32 -> vector<4x256xf32>
    %c5 = arith.constant 5 : index
    %c0_61 = arith.constant 0 : index
    %c0_62 = arith.constant 0 : index
    %85 = vector.load %arg4[%c5, %c0_61, %c0_62] : memref<9x8x4xbf16, #tpu.memory_space<vmem>>, vector<1x8x4xbf16>
    %86 = vector.shape_cast %85 : vector<1x8x4xbf16> to vector<8x4xbf16>
    %87 = arith.truncf %83 : vector<4x256xf32> to vector<4x256xbf16>
    %cst_63 = arith.constant dense<0.000000e+00> : vector<8x256xf32>
    %88 = tpu.matmul %86, %87, %cst_63 {dimension_numbers = #tpu.dot_dimension_numbers<[1], [0], [0], [1], [0, 0, 1, 1], [], []>} : vector<8x4xbf16>, vector<4x256xbf16>, vector<8x256xf32> -> vector<8x256xf32>
    %c5_64 = arith.constant 5 : index
    %c0_65 = arith.constant 0 : index
    %c0_66 = arith.constant 0 : index
    %89 = vector.load %arg5[%c5_64, %c0_65, %c0_66] : memref<9x8x4xbf16, #tpu.memory_space<vmem>>, vector<1x8x4xbf16>
    %90 = vector.shape_cast %89 : vector<1x8x4xbf16> to vector<8x4xbf16>
    %91 = arith.truncf %84 : vector<4x256xf32> to vector<4x256xbf16>
    %cst_67 = arith.constant dense<0.000000e+00> : vector<8x256xf32>
    %92 = tpu.matmul %90, %91, %cst_67 {dimension_numbers = #tpu.dot_dimension_numbers<[1], [0], [0], [1], [0, 0, 1, 1], [], []>} : vector<8x4xbf16>, vector<4x256xbf16>, vector<8x256xf32> -> vector<8x256xf32>
    %93 = arith.addf %88, %92 : vector<8x256xf32>
    %c5_68 = arith.constant 5 : index
    %c0_69 = arith.constant 0 : index
    %c0_70 = arith.constant 0 : index
    %94 = vector.load %arg1[%c5_68, %c0_69, %c0_70] : memref<9x1x256xf32, #tpu.memory_space<vmem>>, vector<1x1x256xf32>
    %95 = vector.shape_cast %94 : vector<1x1x256xf32> to vector<1x256xf32>
    %96 = vector.broadcast %95 : vector<1x256xf32> to vector<8x256xf32>
    %97 = arith.mulf %93, %96 : vector<8x256xf32>
    %98 = arith.addf %82, %97 : vector<8x256xf32>
    %c241_i32 = arith.constant 241 : i32
    %99 = tpu.dynamic_rotate %1 by %c241_i32 dim 1 : vector<4x256xf32>, i32 -> vector<4x256xf32>
    %c241_i32_71 = arith.constant 241 : i32
    %100 = tpu.dynamic_rotate %3 by %c241_i32_71 dim 1 : vector<4x256xf32>, i32 -> vector<4x256xf32>
    %c6 = arith.constant 6 : index
    %c0_72 = arith.constant 0 : index
    %c0_73 = arith.constant 0 : index
    %101 = vector.load %arg4[%c6, %c0_72, %c0_73] : memref<9x8x4xbf16, #tpu.memory_space<vmem>>, vector<1x8x4xbf16>
    %102 = vector.shape_cast %101 : vector<1x8x4xbf16> to vector<8x4xbf16>
    %103 = arith.truncf %99 : vector<4x256xf32> to vector<4x256xbf16>
    %cst_74 = arith.constant dense<0.000000e+00> : vector<8x256xf32>
    %104 = tpu.matmul %102, %103, %cst_74 {dimension_numbers = #tpu.dot_dimension_numbers<[1], [0], [0], [1], [0, 0, 1, 1], [], []>} : vector<8x4xbf16>, vector<4x256xbf16>, vector<8x256xf32> -> vector<8x256xf32>
    %c6_75 = arith.constant 6 : index
    %c0_76 = arith.constant 0 : index
    %c0_77 = arith.constant 0 : index
    %105 = vector.load %arg5[%c6_75, %c0_76, %c0_77] : memref<9x8x4xbf16, #tpu.memory_space<vmem>>, vector<1x8x4xbf16>
    %106 = vector.shape_cast %105 : vector<1x8x4xbf16> to vector<8x4xbf16>
    %107 = arith.truncf %100 : vector<4x256xf32> to vector<4x256xbf16>
    %cst_78 = arith.constant dense<0.000000e+00> : vector<8x256xf32>
    %108 = tpu.matmul %106, %107, %cst_78 {dimension_numbers = #tpu.dot_dimension_numbers<[1], [0], [0], [1], [0, 0, 1, 1], [], []>} : vector<8x4xbf16>, vector<4x256xbf16>, vector<8x256xf32> -> vector<8x256xf32>
    %109 = arith.addf %104, %108 : vector<8x256xf32>
    %c6_79 = arith.constant 6 : index
    %c0_80 = arith.constant 0 : index
    %c0_81 = arith.constant 0 : index
    %110 = vector.load %arg1[%c6_79, %c0_80, %c0_81] : memref<9x1x256xf32, #tpu.memory_space<vmem>>, vector<1x1x256xf32>
    %111 = vector.shape_cast %110 : vector<1x1x256xf32> to vector<1x256xf32>
    %112 = vector.broadcast %111 : vector<1x256xf32> to vector<8x256xf32>
    %113 = arith.mulf %109, %112 : vector<8x256xf32>
    %114 = arith.addf %98, %113 : vector<8x256xf32>
    %c240_i32 = arith.constant 240 : i32
    %115 = tpu.dynamic_rotate %1 by %c240_i32 dim 1 : vector<4x256xf32>, i32 -> vector<4x256xf32>
    %c240_i32_82 = arith.constant 240 : i32
    %116 = tpu.dynamic_rotate %3 by %c240_i32_82 dim 1 : vector<4x256xf32>, i32 -> vector<4x256xf32>
    %c7 = arith.constant 7 : index
    %c0_83 = arith.constant 0 : index
    %c0_84 = arith.constant 0 : index
    %117 = vector.load %arg4[%c7, %c0_83, %c0_84] : memref<9x8x4xbf16, #tpu.memory_space<vmem>>, vector<1x8x4xbf16>
    %118 = vector.shape_cast %117 : vector<1x8x4xbf16> to vector<8x4xbf16>
    %119 = arith.truncf %115 : vector<4x256xf32> to vector<4x256xbf16>
    %cst_85 = arith.constant dense<0.000000e+00> : vector<8x256xf32>
    %120 = tpu.matmul %118, %119, %cst_85 {dimension_numbers = #tpu.dot_dimension_numbers<[1], [0], [0], [1], [0, 0, 1, 1], [], []>} : vector<8x4xbf16>, vector<4x256xbf16>, vector<8x256xf32> -> vector<8x256xf32>
    %c7_86 = arith.constant 7 : index
    %c0_87 = arith.constant 0 : index
    %c0_88 = arith.constant 0 : index
    %121 = vector.load %arg5[%c7_86, %c0_87, %c0_88] : memref<9x8x4xbf16, #tpu.memory_space<vmem>>, vector<1x8x4xbf16>
    %122 = vector.shape_cast %121 : vector<1x8x4xbf16> to vector<8x4xbf16>
    %123 = arith.truncf %116 : vector<4x256xf32> to vector<4x256xbf16>
    %cst_89 = arith.constant dense<0.000000e+00> : vector<8x256xf32>
    %124 = tpu.matmul %122, %123, %cst_89 {dimension_numbers = #tpu.dot_dimension_numbers<[1], [0], [0], [1], [0, 0, 1, 1], [], []>} : vector<8x4xbf16>, vector<4x256xbf16>, vector<8x256xf32> -> vector<8x256xf32>
    %125 = arith.addf %120, %124 : vector<8x256xf32>
    %c7_90 = arith.constant 7 : index
    %c0_91 = arith.constant 0 : index
    %c0_92 = arith.constant 0 : index
    %126 = vector.load %arg1[%c7_90, %c0_91, %c0_92] : memref<9x1x256xf32, #tpu.memory_space<vmem>>, vector<1x1x256xf32>
    %127 = vector.shape_cast %126 : vector<1x1x256xf32> to vector<1x256xf32>
    %128 = vector.broadcast %127 : vector<1x256xf32> to vector<8x256xf32>
    %129 = arith.mulf %125, %128 : vector<8x256xf32>
    %130 = arith.addf %114, %129 : vector<8x256xf32>
    %c239_i32 = arith.constant 239 : i32
    %131 = tpu.dynamic_rotate %1 by %c239_i32 dim 1 : vector<4x256xf32>, i32 -> vector<4x256xf32>
    %c239_i32_93 = arith.constant 239 : i32
    %132 = tpu.dynamic_rotate %3 by %c239_i32_93 dim 1 : vector<4x256xf32>, i32 -> vector<4x256xf32>
    %c8 = arith.constant 8 : index
    %c0_94 = arith.constant 0 : index
    %c0_95 = arith.constant 0 : index
    %133 = vector.load %arg4[%c8, %c0_94, %c0_95] : memref<9x8x4xbf16, #tpu.memory_space<vmem>>, vector<1x8x4xbf16>
    %134 = vector.shape_cast %133 : vector<1x8x4xbf16> to vector<8x4xbf16>
    %135 = arith.truncf %131 : vector<4x256xf32> to vector<4x256xbf16>
    %cst_96 = arith.constant dense<0.000000e+00> : vector<8x256xf32>
    %136 = tpu.matmul %134, %135, %cst_96 {dimension_numbers = #tpu.dot_dimension_numbers<[1], [0], [0], [1], [0, 0, 1, 1], [], []>} : vector<8x4xbf16>, vector<4x256xbf16>, vector<8x256xf32> -> vector<8x256xf32>
    %c8_97 = arith.constant 8 : index
    %c0_98 = arith.constant 0 : index
    %c0_99 = arith.constant 0 : index
    %137 = vector.load %arg5[%c8_97, %c0_98, %c0_99] : memref<9x8x4xbf16, #tpu.memory_space<vmem>>, vector<1x8x4xbf16>
    %138 = vector.shape_cast %137 : vector<1x8x4xbf16> to vector<8x4xbf16>
    %139 = arith.truncf %132 : vector<4x256xf32> to vector<4x256xbf16>
    %cst_100 = arith.constant dense<0.000000e+00> : vector<8x256xf32>
    %140 = tpu.matmul %138, %139, %cst_100 {dimension_numbers = #tpu.dot_dimension_numbers<[1], [0], [0], [1], [0, 0, 1, 1], [], []>} : vector<8x4xbf16>, vector<4x256xbf16>, vector<8x256xf32> -> vector<8x256xf32>
    %141 = arith.addf %136, %140 : vector<8x256xf32>
    %c8_101 = arith.constant 8 : index
    %c0_102 = arith.constant 0 : index
    %c0_103 = arith.constant 0 : index
    %142 = vector.load %arg1[%c8_101, %c0_102, %c0_103] : memref<9x1x256xf32, #tpu.memory_space<vmem>>, vector<1x1x256xf32>
    %143 = vector.shape_cast %142 : vector<1x1x256xf32> to vector<1x256xf32>
    %144 = vector.broadcast %143 : vector<1x256xf32> to vector<8x256xf32>
    %145 = arith.mulf %141, %144 : vector<8x256xf32>
    %146 = arith.addf %130, %145 : vector<8x256xf32>
    %c0_104 = arith.constant 0 : index
    %c0_105 = arith.constant 0 : index
    %147 = vector.load %arg6[%c0_104, %c0_105] : memref<8x1xf32, #tpu.memory_space<vmem>>, vector<8x1xf32>
    %148 = vector.broadcast %147 : vector<8x1xf32> to vector<8x256xf32>
    %149 = arith.addf %146, %148 : vector<8x256xf32>
    %c0_106 = arith.constant 0 : index
    %c0_107 = arith.constant 0 : index
    %c0_108 = arith.constant 0 : index
    %150 = vector.load %arg7[%c0_106, %c0_107, %c0_108] : memref<1x8x256xf32, #tpu.memory_space<vmem>>, vector<1x8x256xf32>
    %151 = vector.shape_cast %150 : vector<1x8x256xf32> to vector<8x256xf32>
    %152 = vector.shape_cast %149 : vector<8x256xf32> to vector<1x8x256xf32>
    tpu.vector_store %arg7[%c0_106, %c0_107, %c0_108], %152 {strides = array<i32>} : memref<1x8x256xf32, #tpu.memory_space<vmem>>, vector<1x8x256xf32>,
    return
  }
  func.func @transform_0(%arg0: i32) -> (i32, i32, i32) {
    %c0_i32 = arith.constant 0 : i32
    %c0_i32_0 = arith.constant 0 : i32
    %c0_i32_1 = arith.constant 0 : i32
    %c0_i32_2 = arith.constant 0 : i32
    return %c0_i32, %c0_i32_0, %c0_i32_1 : i32, i32, i32
  }
  func.func @transform_1(%arg0: i32) -> (i32, i32, i32) {
    %c0_i32 = arith.constant 0 : i32
    %c0_i32_0 = arith.constant 0 : i32
    %c0_i32_1 = arith.constant 0 : i32
    return %arg0, %c0_i32, %c0_i32_0 : i32, i32, i32
  }
  func.func @transform_2(%arg0: i32) -> (i32, i32, i32) {
    %c0_i32 = arith.constant 0 : i32
    %c0_i32_0 = arith.constant 0 : i32
    %c0_i32_1 = arith.constant 0 : i32
    return %arg0, %c0_i32, %c0_i32_0 : i32, i32, i32
  }
  func.func @transform_3(%arg0: i32) -> (i32, i32, i32) {
    %c0_i32 = arith.constant 0 : i32
    %c0_i32_0 = arith.constant 0 : i32
    %c0_i32_1 = arith.constant 0 : i32
    %c0_i32_2 = arith.constant 0 : i32
    return %c0_i32, %c0_i32_0, %c0_i32_1 : i32, i32, i32
  }
  func.func @transform_4(%arg0: i32) -> (i32, i32, i32) {
    %c0_i32 = arith.constant 0 : i32
    %c0_i32_0 = arith.constant 0 : i32
    %c0_i32_1 = arith.constant 0 : i32
    %c0_i32_2 = arith.constant 0 : i32
    return %c0_i32, %c0_i32_0, %c0_i32_1 : i32, i32, i32
  }
  func.func @transform_5(%arg0: i32) -> (i32, i32) {
    %c0_i32 = arith.constant 0 : i32
    %c0_i32_0 = arith.constant 0 : i32
    %c0_i32_1 = arith.constant 0 : i32
    return %c0_i32, %c0_i32_0 : i32, i32
  }
  func.func @transform_6(%arg0: i32) -> (i32, i32, i32) {
    %c0_i32 = arith.constant 0 : i32
    %c0_i32_0 = arith.constant 0 : i32
    %c0_i32_1 = arith.constant 0 : i32
    return %arg0, %c0_i32, %c0_i32_0 : i32, i32, i32
  }
}

</mosaic_0001>

<llo_original>
// kernel: conv_layer_forward.2
$region0: #{conv_layer_forward.2}
  #allocation0 [shape = 'u32[]', space=smem, size = 0x4, offset = 0x4, fixed_abs, tag = 'smem constant byte address 0x4 - core index']
  #allocation1 [shape = 'u32[144,128]{1,0:T(1,128)}', space=vmem, size = 0x12000, scoped, tag = 'internal scratch']
  %s0 = inlined_call_operand.vmem [shape: f32[2,32], index: 0, kind: input, shape index: {}]
  %s1 = inlined_call_operand.vmem [shape: bf16[32,64], index: 1, kind: input, shape index: {}]
  %s2 = inlined_call_operand.vmem [shape: f32[1,64], index: 2, kind: input, shape index: {}]
  %s3 = inlined_call_operand.vmem [shape: f32[1,64], index: 3, kind: input, shape index: {}]
  %s4 = inlined_call_operand.vmem [shape: f32[1,64], index: 4, kind: input, shape index: {}]
  %s5 = inlined_call_operand.vmem [shape: bf16[64,1024], index: 5, kind: input, shape index: {}]
  %s6 = inlined_call_operand.vmem [shape: f32[1,1024], index: 6, kind: input, shape index: {}]
  %s7 = inlined_call_operand.vmem [shape: f32[1,1024], index: 7, kind: input, shape index: {}]
  %s8 = inlined_call_operand.vmem [shape: f32[1,1024], index: 8, kind: input, shape index: {}]
  %s9 = inlined_call_operand.vmem [shape: f32[2,1024], index: 9, kind: output, shape index: {}]
  %s10 = sld [smem:[#allocation0]]
  $region46: #{conv_layer_forward.2} parent=0
    _
  %s12 = ssub.s32 1, %s10
  %s13 = scalar_select 0, %s12, %s10
  // Predicated region
  $region2: #{conv_layer_forward.2} parent=0 // pred_check
    _
  $region3: #{conv_layer_forward.2} parent=0 // pred_check_branch
    %15 = sbr.rel (0) target = $region5
  $region4: #{conv_layer_forward.2} parent=0 // pred_region
    _
  $region5: #{conv_layer_forward.2} parent=0 // pred_fallthru
    _
  // Predicated region
  $region6: #{conv_layer_forward.2} parent=0 // pred_check
    _
  $region7: #{conv_layer_forward.2} parent=0 // pred_check_branch
    %17 = sbr.rel (0) target = $region9
  $region8: #{conv_layer_forward.2} parent=0 // pred_region
    _
  $region9: #{conv_layer_forward.2} parent=0 // pred_fallthru
    _
  // Predicated region
  $region10: #{conv_layer_forward.2} parent=0 // pred_check
    _
  $region11: #{conv_layer_forward.2} parent=0 // pred_check_branch
    %19 = sbr.rel (0) target = $region13
  $region12: #{conv_layer_forward.2} parent=0 // pred_region
    _
  $region13: #{conv_layer_forward.2} parent=0 // pred_fallthru
    _
  // Predicated region
  $region14: #{conv_layer_forward.2} parent=0 // pred_check
    _
  $region15: #{conv_layer_forward.2} parent=0 // pred_check_branch
    %21 = sbr.rel (0) target = $region17
  $region16: #{conv_layer_forward.2} parent=0 // pred_region
    _
  $region17: #{conv_layer_forward.2} parent=0 // pred_fallthru
    _
  // Predicated region
  $region18: #{conv_layer_forward.2} parent=0 // pred_check
    _
  $region19: #{conv_layer_forward.2} parent=0 // pred_check_branch
    %23 = sbr.rel (0) target = $region21
  $region20: #{conv_layer_forward.2} parent=0 // pred_region
    _
  $region21: #{conv_layer_forward.2} parent=0 // pred_fallthru
    _
  // Predicated region
  $region22: #{conv_layer_forward.2} parent=0 // pred_check
    _
  $region23: #{conv_layer_forward.2} parent=0 // pred_check_branch
    %25 = sbr.rel (0) target = $region25
  $region24: #{conv_layer_forward.2} parent=0 // pred_region
    _
  $region25: #{conv_layer_forward.2} parent=0 // pred_fallthru
    _
  // Predicated region
  $region26: #{conv_layer_forward.2} parent=0 // pred_check
    _
  $region27: #{conv_layer_forward.2} parent=0 // pred_check_branch
    %27 = sbr.rel (0) target = $region29
  $region28: #{conv_layer_forward.2} parent=0 // pred_region
    _
  $region29: #{conv_layer_forward.2} parent=0 // pred_fallthru
    _
  // Predicated region
  $region30: #{conv_layer_forward.2} parent=0 // pred_check
    _
  $region31: #{conv_layer_forward.2} parent=0 // pred_check_branch
    %29 = sbr.rel (0) target = $region33
  $region32: #{conv_layer_forward.2} parent=0 // pred_region
    _
  $region33: #{conv_layer_forward.2} parent=0 // pred_fallthru
    _
  // Predicated region
  $region34: #{conv_layer_forward.2} parent=0 // pred_check
    _
  $region35: #{conv_layer_forward.2} parent=0 // pred_check_branch
    %31 = sbr.rel (0) target = $region37
  $region36: #{conv_layer_forward.2} parent=0 // pred_region
    _
  $region37: #{conv_layer_forward.2} parent=0 // pred_fallthru
    _
  %v33 = vld [vmem:[%s0] sm:$0x3]
  %v34 = vpack.c.bf16 %v33, %v33
  %v35 = vld [vmem:[%s1] sm:$0xf]
  %v36 = vld [vmem:[%s1 + $0x4] sm:$0xf]
  %v37 = vld [vmem:[%s1 + $0x8] sm:$0xf]
  %v38 = vld [vmem:[%s1 + $0xc] sm:$0xf]
  %v39 = vld [vmem:[%s2] sm:$0x1]
  %v41 = vlaneseq
  %v42 = vshrl.u32 %v41, 7
  %v43 = vsub.s32 0, %v42
  %v44 = vrot.slane %v39, %v43
  %v50 = vunpack.c.l.b16 %v35
  %v51 = vunpack.c.l.b16 %v36
  %v52 = vunpack.c.l.b16 %v37
  %v53 = vunpack.c.l.b16 %v38
  %v54 = vpack.c.b16 %v51, %v50
  %v55 = vpack.c.b16 %v53, %v52
  %vm58 = vcmask 261120
  %v60 = vsel %vm58, %v34, 0
  %62 = vmatprep.subr.bf16.mxu0 0
  %63 = vmatpush1.bf16.msra.mxu0 %v54
  %64 = vmatprep.subr.bf16.mxu0 0
  %65 = vmatpush1.bf16.msra.mxu0 %v55
  %66 = vmatprep.subr.bf16.mxu0 0
  %67 = vmatpush1.bf16.msra.mxu0 0
  %68 = vmatprep.subr.bf16.mxu0 0
  %69 = vmatpush1.bf16.msra.mxu0 0
  %70 = vmatprep.subr.bf16.mxu0 0
  %71 = vmatpush1.bf16.msra.mxu0 0
  %72 = vmatprep.subr.bf16.mxu0 0
  %73 = vmatpush1.bf16.msra.mxu0 0
  %74 = vmatprep.subr.bf16.mxu0 0
  %75 = vmatpush1.bf16.msra.mxu0 0
  %76 = vmatprep.subr.bf16.mxu0 0
  %77 = vmatpush1.bf16.msra.mxu0 0
  %78 = vmatprep.subr.bf16.mxu0 0
  %79 = vmatpush1.bf16.msra.mxu0 0
  %80 = vmatprep.subr.bf16.mxu0 0
  %81 = vmatpush1.bf16.msra.mxu0 0
  %82 = vmatprep.subr.bf16.mxu0 0
  %83 = vmatpush1.bf16.msra.mxu0 0
  %84 = vmatprep.subr.bf16.mxu0 0
  %85 = vmatpush1.bf16.msra.mxu0 0
  %86 = vmatprep.subr.bf16.mxu0 0
  %87 = vmatpush1.bf16.msra.mxu0 0
  %88 = vmatprep.subr.bf16.mxu0 0
  %89 = vmatpush1.bf16.msra.mxu0 0
  %90 = vmatprep.subr.bf16.mxu0 0
  %91 = vmatpush1.bf16.msra.mxu0 0
  %92 = vmatprep.subr.bf16.mxu0 0
  %93 = vmatpush1.bf16.msra.mxu0 0
  %94 = vmatprep.mubr.bf16.mxu0 0
  %95 = vmatmul.mubr.bf16.gmra.mrb[0].mxu0 %v60
  %v96 = vpop.f32.mrb[0].mxu0
  %v97 = vadd.f32 %v44, %v96
  %v98 = vpop.f32.mrb[0].mxu0
  %v99 = vpop.f32.mrb[0].mxu0
  %v100 = vpop.f32.mrb[0].mxu0
  %101 = vdwg.mxu0
  %v102 = vmax.f32 %v97, 0.0
  %vm103 = vcmask 517120
  %v104 = vsel %vm103, %v102, 0.0
  %105 = vadd.xlane.f32.xlu0 %v104
  %v106 = vpop.xlane.xlu0 %105
  %v107 = vrcp.pop 64.0
  %v108 = vmul.f32 %v106, %v107
  %v109 = vmul.f32 %v102, %v102
  %v110 = vsel %vm103, %v109, 0.0
  %111 = vadd.xlane.f32.xlu0 %v110
  %v112 = vpop.xlane.xlu0 %111
  %v113 = vmul.f32 %v112, %v107
  %v114 = vmul.f32 %v108, %v108
  %v115 = vsub.f32 %v113, %v114
  %v116 = vsub.f32 %v102, %v108
  %v117 = vadd.f32 %v115, 1e-05
  %v118 = vrsqrt.pop %v117
  %v119 = vmul.f32 %v116, %v118
  %v120 = vld [vmem:[%s3] sm:$0x1]
  %v122 = vlaneseq
  %v123 = vshrl.u32 %v122, 7
  %v124 = vsub.s32 0, %v123
  %v125 = vrot.slane %v120, %v124
  %v127 = vmul.f32 %v119, %v125
  %v128 = vld [vmem:[%s4] sm:$0x1]
  %v130 = vlaneseq
  %v131 = vshrl.u32 %v130, 7
  %v132 = vsub.s32 0, %v131
  %v133 = vrot.slane %v128, %v132
  %v135 = vadd.f32 %v127, %v133
  %v136 = vpack.c.bf16 %v135, %v135
  %v137 = vld [vmem:[%s5] sm:$0xff]
  %v138 = vld [vmem:[%s5 + $0x8] sm:$0xff]
  %v139 = vld [vmem:[%s5 + $0x10] sm:$0xff]
  %v140 = vld [vmem:[%s5 + $0x18] sm:$0xff]
  %v141 = vld [vmem:[%s5 + $0x20] sm:$0xff]
  %v142 = vld [vmem:[%s5 + $0x28] sm:$0xff]
  %v143 = vld [vmem:[%s5 + $0x30] sm:$0xff]
  %v144 = vld [vmem:[%s5 + $0x38] sm:$0xff]
  %v145 = vld [vmem:[%s5 + $0x40] sm:$0xff]
  %v146 = vld [vmem:[%s5 + $0x48] sm:$0xff]
  %v147 = vld [vmem:[%s5 + $0x50] sm:$0xff]
  %v148 = vld [vmem:[%s5 + $0x58] sm:$0xff]
  %v149 = vld [vmem:[%s5 + $0x60] sm:$0xff]
  %v150 = vld [vmem:[%s5 + $0x68] sm:$0xff]
  %v151 = vld [vmem:[%s5 + $0x70] sm:$0xff]
  %v152 = vld [vmem:[%s5 + $0x78] sm:$0xff]
  %v153 = vld [vmem:[%s5 + $0x80] sm:$0xff]
  %v154 = vld [vmem:[%s5 + $0x88] sm:$0xff]
  %v155 = vld [vmem:[%s5 + $0x90] sm:$0xff]
  %v156 = vld [vmem:[%s5 + $0x98] sm:$0xff]
  %v157 = vld [vmem:[%s5 + $0xa0] sm:$0xff]
  %v158 = vld [vmem:[%s5 + $0xa8] sm:$0xff]
  %v159 = vld [vmem:[%s5 + $0xb0] sm:$0xff]
  %v160 = vld [vmem:[%s5 + $0xb8] sm:$0xff]
  %v161 = vld [vmem:[%s5 + $0xc0] sm:$0xff]
  %v162 = vld [vmem:[%s5 + $0xc8] sm:$0xff]
  %v163 = vld [vmem:[%s5 + $0xd0] sm:$0xff]
  %v164 = vld [vmem:[%s5 + $0xd8] sm:$0xff]
  %v165 = vld [vmem:[%s5 + $0xe0] sm:$0xff]
  %v166 = vld [vmem:[%s5 + $0xe8] sm:$0xff]
  %v167 = vld [vmem:[%s5 + $0xf0] sm:$0xff]
  %v168 = vld [vmem:[%s5 + $0xf8] sm:$0xff]
  %v169 = vld [vmem:[%s6] sm:$0xff]
  %v171 = vlaneseq
  %v172 = vshrl.u32 %v171, 7
  %v173 = vsub.s32 0, %v172
  %v174 = vrot.slane %v169, %v173
  %v175 = vlaneseq
  %v176 = vshrl.u32 %v175, 7
  %v177 = vsub.s32 1, %v176
  %v178 = vrot.slane %v169, %v177
  %v179 = vlaneseq
  %v180 = vshrl.u32 %v179, 7
  %v181 = vsub.s32 2, %v180
  %v182 = vrot.slane %v169, %v181
  %v183 = vlaneseq
  %v184 = vshrl.u32 %v183, 7
  %v185 = vsub.s32 3, %v184
  %v186 = vrot.slane %v169, %v185
  %v187 = vlaneseq
  %v188 = vshrl.u32 %v187, 7
  %v189 = vsub.s32 4, %v188
  %v190 = vrot.slane %v169, %v189
  %v191 = vlaneseq
  %v192 = vshrl.u32 %v191, 7
  %v193 = vsub.s32 5, %v192
  %v194 = vrot.slane %v169, %v193
  %v195 = vlaneseq
  %v196 = vshrl.u32 %v195, 7
  %v197 = vsub.s32 6, %v196
  %v198 = vrot.slane %v169, %v197
  %v199 = vlaneseq
  %v200 = vshrl.u32 %v199, 7
  %v201 = vsub.s32 7, %v200
  %v202 = vrot.slane %v169, %v201
  %v243 = vunpack.c.l.b16 %v137
  %v244 = vunpack.c.h.b16 %v137
  %v245 = vunpack.c.l.b16 %v138
  %v246 = vunpack.c.h.b16 %v138
  %v247 = vunpack.c.l.b16 %v139
  %v248 = vunpack.c.h.b16 %v139
  %v249 = vunpack.c.l.b16 %v140
  %v250 = vunpack.c.h.b16 %v140
  %v251 = vunpack.c.l.b16 %v141
  %v252 = vunpack.c.h.b16 %v141
  %v253 = vunpack.c.l.b16 %v142
  %v254 = vunpack.c.h.b16 %v142
  %v255 = vunpack.c.l.b16 %v143
  %v256 = vunpack.c.h.b16 %v143
  %v257 = vunpack.c.l.b16 %v144
  %v258 = vunpack.c.h.b16 %v144
  %v259 = vunpack.c.l.b16 %v145
  %v260 = vunpack.c.h.b16 %v145
  %v261 = vunpack.c.l.b16 %v146
  %v262 = vunpack.c.h.b16 %v146
  %v263 = vunpack.c.l.b16 %v147
  %v264 = vunpack.c.h.b16 %v147
  %v265 = vunpack.c.l.b16 %v148
  %v266 = vunpack.c.h.b16 %v148
  %v267 = vunpack.c.l.b16 %v149
  %v268 = vunpack.c.h.b16 %v149
  %v269 = vunpack.c.l.b16 %v150
  %v270 = vunpack.c.h.b16 %v150
  %v271 = vunpack.c.l.b16 %v151
  %v272 = vunpack.c.h.b16 %v151
  %v273 = vunpack.c.l.b16 %v152
  %v274 = vunpack.c.h.b16 %v152
  %v275 = vunpack.c.l.b16 %v153
  %v276 = vunpack.c.h.b16 %v153
  %v277 = vunpack.c.l.b16 %v154
  %v278 = vunpack.c.h.b16 %v154
  %v279 = vunpack.c.l.b16 %v155
  %v280 = vunpack.c.h.b16 %v155
  %v281 = vunpack.c.l.b16 %v156
  %v282 = vunpack.c.h.b16 %v156
  %v283 = vunpack.c.l.b16 %v157
  %v284 = vunpack.c.h.b16 %v157
  %v285 = vunpack.c.l.b16 %v158
  %v286 = vunpack.c.h.b16 %v158
  %v287 = vunpack.c.l.b16 %v159
  %v288 = vunpack.c.h.b16 %v159
  %v289 = vunpack.c.l.b16 %v160
  %v290 = vunpack.c.h.b16 %v160
  %v291 = vunpack.c.l.b16 %v161
  %v292 = vunpack.c.h.b16 %v161
  %v293 = vunpack.c.l.b16 %v162
  %v294 = vunpack.c.h.b16 %v162
  %v295 = vunpack.c.l.b16 %v163
  %v296 = vunpack.c.h.b16 %v163
  %v297 = vunpack.c.l.b16 %v164
  %v298 = vunpack.c.h.b16 %v164
  %v299 = vunpack.c.l.b16 %v165
  %v300 = vunpack.c.h.b16 %v165
  %v301 = vunpack.c.l.b16 %v166
  %v302 = vunpack.c.h.b16 %v166
  %v303 = vunpack.c.l.b16 %v167
  %v304 = vunpack.c.h.b16 %v167
  %v305 = vunpack.c.l.b16 %v168
  %v306 = vunpack.c.h.b16 %v168
  %v307 = vpack.c.b16 %v251, %v243
  %v308 = vpack.c.b16 %v252, %v244
  %v309 = vpack.c.b16 %v253, %v245
  %v310 = vpack.c.b16 %v254, %v246
  %v311 = vpack.c.b16 %v255, %v247
  %v312 = vpack.c.b16 %v256, %v248
  %v313 = vpack.c.b16 %v257, %v249
  %v314 = vpack.c.b16 %v258, %v250
  %v315 = vpack.c.b16 %v267, %v259
  %v316 = vpack.c.b16 %v268, %v260
  %v317 = vpack.c.b16 %v269, %v261
  %v318 = vpack.c.b16 %v270, %v262
  %v319 = vpack.c.b16 %v271, %v263
  %v320 = vpack.c.b16 %v272, %v264
  %v321 = vpack.c.b16 %v273, %v265
  %v322 = vpack.c.b16 %v274, %v266
  %v323 = vpack.c.b16 %v283, %v275
  %v324 = vpack.c.b16 %v284, %v276
  %v325 = vpack.c.b16 %v285, %v277
  %v326 = vpack.c.b16 %v286, %v278
  %v327 = vpack.c.b16 %v287, %v279
  %v328 = vpack.c.b16 %v288, %v280
  %v329 = vpack.c.b16 %v289, %v281
  %v330 = vpack.c.b16 %v290, %v282
  %v331 = vpack.c.b16 %v299, %v291
  %v332 = vpack.c.b16 %v300, %v292
  %v333 = vpack.c.b16 %v301, %v293
  %v334 = vpack.c.b16 %v302, %v294
  %v335 = vpack.c.b16 %v303, %v295
  %v336 = vpack.c.b16 %v304, %v296
  %v337 = vpack.c.b16 %v305, %v297
  %v338 = vpack.c.b16 %v306, %v298
  %vm371 = vcmask 523264
  %v373 = vsel %vm371, %v136, 0
  %375 = vmatprep.subr.bf16.mxu0 %v308
  %376 = vmatpush1.bf16.msra.mxu0 %v307
  %377 = vmatprep.subr.bf16.mxu0 %v316
  %378 = vmatpush1.bf16.msra.mxu0 %v315
  %379 = vmatprep.subr.bf16.mxu0 %v324
  %380 = vmatpush1.bf16.msra.mxu0 %v323
  %381 = vmatprep.subr.bf16.mxu0 %v332
  %382 = vmatpush1.bf16.msra.mxu0 %v331
  %383 = vmatprep.subr.bf16.mxu0 0
  %384 = vmatpush1.bf16.msra.mxu0 0
  %385 = vmatprep.subr.bf16.mxu0 0
  %386 = vmatpush1.bf16.msra.mxu0 0
  %387 = vmatprep.subr.bf16.mxu0 0
  %388 = vmatpush1.bf16.msra.mxu0 0
  %389 = vmatprep.subr.bf16.mxu0 0
  %390 = vmatpush1.bf16.msra.mxu0 0
  %391 = vmatprep.subr.bf16.mxu0 0
  %392 = vmatpush1.bf16.msra.mxu0 0
  %393 = vmatprep.subr.bf16.mxu0 0
  %394 = vmatpush1.bf16.msra.mxu0 0
  %395 = vmatprep.subr.bf16.mxu0 0
  %396 = vmatpush1.bf16.msra.mxu0 0
  %397 = vmatprep.subr.bf16.mxu0 0
  %398 = vmatpush1.bf16.msra.mxu0 0
  %399 = vmatprep.subr.bf16.mxu0 0
  %400 = vmatpush1.bf16.msra.mxu0 0
  %401 = vmatprep.subr.bf16.mxu0 0
  %402 = vmatpush1.bf16.msra.mxu0 0
  %403 = vmatprep.subr.bf16.mxu0 0
  %404 = vmatpush1.bf16.msra.mxu0 0
  %405 = vmatprep.subr.bf16.mxu0 0
  %406 = vmatpush1.bf16.msra.mxu0 0
  %407 = vmatprep.mubr.bf16.mxu0 0
  %408 = vmatmul.mubr.bf16.gmra.mrb[0].mxu0 %v373
  %v409 = vpop.f32.mrb[0].mxu0
  %v410 = vadd.f32 %v174, %v409
  %v411 = vpop.f32.mrb[0].mxu0
  %v412 = vadd.f32 %v178, %v411
  %v413 = vpop.f32.mrb[0].mxu0
  %v414 = vpop.f32.mrb[0].mxu0
  %415 = vdwg.mxu0
  %416 = vmatprep.subr.bf16.mxu0 %v310
  %417 = vmatpush1.bf16.msra.mxu0 %v309
  %418 = vmatprep.subr.bf16.mxu0 %v318
  %419 = vmatpush1.bf16.msra.mxu0 %v317
  %420 = vmatprep.subr.bf16.mxu0 %v326
  %421 = vmatpush1.bf16.msra.mxu0 %v325
  %422 = vmatprep.subr.bf16.mxu0 %v334
  %423 = vmatpush1.bf16.msra.mxu0 %v333
  %424 = vmatprep.subr.bf16.mxu0 0
  %425 = vmatpush1.bf16.msra.mxu0 0
  %426 = vmatprep.subr.bf16.mxu0 0
  %427 = vmatpush1.bf16.msra.mxu0 0
  %428 = vmatprep.subr.bf16.mxu0 0
  %429 = vmatpush1.bf16.msra.mxu0 0
  %430 = vmatprep.subr.bf16.mxu0 0
  %431 = vmatpush1.bf16.msra.mxu0 0
  %432 = vmatprep.subr.bf16.mxu0 0
  %433 = vmatpush1.bf16.msra.mxu0 0
  %434 = vmatprep.subr.bf16.mxu0 0
  %435 = vmatpush1.bf16.msra.mxu0 0
  %436 = vmatprep.subr.bf16.mxu0 0
  %437 = vmatpush1.bf16.msra.mxu0 0
  %438 = vmatprep.subr.bf16.mxu0 0
  %439 = vmatpush1.bf16.msra.mxu0 0
  %440 = vmatprep.subr.bf16.mxu0 0
  %441 = vmatpush1.bf16.msra.mxu0 0
  %442 = vmatprep.subr.bf16.mxu0 0
  %443 = vmatpush1.bf16.msra.mxu0 0
  %444 = vmatprep.subr.bf16.mxu0 0
  %445 = vmatpush1.bf16.msra.mxu0 0
  %446 = vmatprep.subr.bf16.mxu0 0
  %447 = vmatpush1.bf16.msra.mxu0 0
  %448 = vmatprep.mubr.bf16.mxu0 0
  %449 = vmatmul.mubr.bf16.gmra.mrb[0].mxu0 %v373
  %v450 = vpop.f32.mrb[0].mxu0
  %v451 = vadd.f32 %v182, %v450
  %v452 = vpop.f32.mrb[0].mxu0
  %v453 = vadd.f32 %v186, %v452
  %v454 = vpop.f32.mrb[0].mxu0
  %v455 = vpop.f32.mrb[0].mxu0
  %456 = vdwg.mxu0
  %457 = vmatprep.subr.bf16.mxu0 %v312
  %458 = vmatpush1.bf16.msra.mxu0 %v311
  %459 = vmatprep.subr.bf16.mxu0 %v320
  %460 = vmatpush1.bf16.msra.mxu0 %v319
  %461 = vmatprep.subr.bf16.mxu0 %v328
  %462 = vmatpush1.bf16.msra.mxu0 %v327
  %463 = vmatprep.subr.bf16.mxu0 %v336
  %464 = vmatpush1.bf16.msra.mxu0 %v335
  %465 = vmatprep.subr.bf16.mxu0 0
  %466 = vmatpush1.bf16.msra.mxu0 0
  %467 = vmatprep.subr.bf16.mxu0 0
  %468 = vmatpush1.bf16.msra.mxu0 0
  %469 = vmatprep.subr.bf16.mxu0 0
  %470 = vmatpush1.bf16.msra.mxu0 0
  %471 = vmatprep.subr.bf16.mxu0 0
  %472 = vmatpush1.bf16.msra.mxu0 0
  %473 = vmatprep.subr.bf16.mxu0 0
  %474 = vmatpush1.bf16.msra.mxu0 0
  %475 = vmatprep.subr.bf16.mxu0 0
  %476 = vmatpush1.bf16.msra.mxu0 0
  %477 = vmatprep.subr.bf16.mxu0 0
  %478 = vmatpush1.bf16.msra.mxu0 0
  %479 = vmatprep.subr.bf16.mxu0 0
  %480 = vmatpush1.bf16.msra.mxu0 0
  %481 = vmatprep.subr.bf16.mxu0 0
  %482 = vmatpush1.bf16.msra.mxu0 0
  %483 = vmatprep.subr.bf16.mxu0 0
  %484 = vmatpush1.bf16.msra.mxu0 0
  %485 = vmatprep.subr.bf16.mxu0 0
  %486 = vmatpush1.bf16.msra.mxu0 0
  %487 = vmatprep.subr.bf16.mxu0 0
  %488 = vmatpush1.bf16.msra.mxu0 0
  %489 = vmatprep.mubr.bf16.mxu0 0
  %490 = vmatmul.mubr.bf16.gmra.mrb[0].mxu0 %v373
  %v491 = vpop.f32.mrb[0].mxu0
  %v492 = vadd.f32 %v190, %v491
  %v493 = vpop.f32.mrb[0].mxu0
  %v494 = vadd.f32 %v194, %v493
  %v495 = vpop.f32.mrb[0].mxu0
  %v496 = vpop.f32.mrb[0].mxu0
  %497 = vdwg.mxu0
  %498 = vmatprep.subr.bf16.mxu0 %v314
  %499 = vmatpush1.bf16.msra.mxu0 %v313
  %500 = vmatprep.subr.bf16.mxu0 %v322
  %501 = vmatpush1.bf16.msra.mxu0 %v321
  %502 = vmatprep.subr.bf16.mxu0 %v330
  %503 = vmatpush1.bf16.msra.mxu0 %v329
  %504 = vmatprep.subr.bf16.mxu0 %v338
  %505 = vmatpush1.bf16.msra.mxu0 %v337
  %506 = vmatprep.subr.bf16.mxu0 0
  %507 = vmatpush1.bf16.msra.mxu0 0
  %508 = vmatprep.subr.bf16.mxu0 0
  %509 = vmatpush1.bf16.msra.mxu0 0
  %510 = vmatprep.subr.bf16.mxu0 0
  %511 = vmatpush1.bf16.msra.mxu0 0
  %512 = vmatprep.subr.bf16.mxu0 0
  %513 = vmatpush1.bf16.msra.mxu0 0
  %514 = vmatprep.subr.bf16.mxu0 0
  %515 = vmatpush1.bf16.msra.mxu0 0
  %516 = vmatprep.subr.bf16.mxu0 0
  %517 = vmatpush1.bf16.msra.mxu0 0
  %518 = vmatprep.subr.bf16.mxu0 0
  %519 = vmatpush1.bf16.msra.mxu0 0
  %520 = vmatprep.subr.bf16.mxu0 0
  %521 = vmatpush1.bf16.msra.mxu0 0
  %522 = vmatprep.subr.bf16.mxu0 0
  %523 = vmatpush1.bf16.msra.mxu0 0
  %524 = vmatprep.subr.bf16.mxu0 0
  %525 = vmatpush1.bf16.msra.mxu0 0
  %526 = vmatprep.subr.bf16.mxu0 0
  %527 = vmatpush1.bf16.msra.mxu0 0
  %528 = vmatprep.subr.bf16.mxu0 0
  %529 = vmatpush1.bf16.msra.mxu0 0
  %530 = vmatprep.mubr.bf16.mxu0 0
  %531 = vmatmul.mubr.bf16.gmra.mrb[0].mxu0 %v373
  %v532 = vpop.f32.mrb[0].mxu0
  %v533 = vadd.f32 %v198, %v532
  %v534 = vpop.f32.mrb[0].mxu0
  %v535 = vadd.f32 %v202, %v534
  %v536 = vpop.f32.mrb[0].mxu0
  %v537 = vpop.f32.mrb[0].mxu0
  %538 = vdwg.mxu0
  %v539 = vmax.f32 %v410, 0.0
  %v540 = vmax.f32 %v412, 0.0
  %v541 = vmax.f32 %v451, 0.0
  %v542 = vmax.f32 %v453, 0.0
  %v543 = vmax.f32 %v492, 0.0
  %v544 = vmax.f32 %v494, 0.0
  %v545 = vmax.f32 %v533, 0.0
  %v546 = vmax.f32 %v535, 0.0
  %vm547 = vcmask 1041408
  %v548 = vsel %vm547, %v539, 0.0
  %v549 = vsel %vm547, %v540, 0.0
  %v550 = vadd.f32 %v548, %v549
  %v551 = vsel %vm547, %v541, 0.0
  %v552 = vadd.f32 %v550, %v551
  %v553 = vsel %vm547, %v542, 0.0
  %v554 = vadd.f32 %v552, %v553
  %v555 = vsel %vm547, %v543, 0.0
  %v556 = vadd.f32 %v554, %v555
  %v557 = vsel %vm547, %v544, 0.0
  %v558 = vadd.f32 %v556, %v557
  %v559 = vsel %vm547, %v545, 0.0
  %v560 = vadd.f32 %v558, %v559
  %v561 = vsel %vm547, %v546, 0.0
  %v562 = vadd.f32 %v560, %v561
  %563 = vadd.xlane.f32.xlu0 %v562
  %v564 = vpop.xlane.xlu0 %563
  %v565 = vrcp.pop 1024.0
  %v566 = vmul.f32 %v564, %v565
  %v567 = vmul.f32 %v539, %v539
  %v568 = vmul.f32 %v540, %v540
  %v569 = vmul.f32 %v541, %v541
  %v570 = vmul.f32 %v542, %v542
  %v571 = vmul.f32 %v543, %v543
  %v572 = vmul.f32 %v544, %v544
  %v573 = vmul.f32 %v545, %v545
  %v574 = vmul.f32 %v546, %v546
  %v575 = vsel %vm547, %v567, 0.0
  %v576 = vsel %vm547, %v568, 0.0
  %v577 = vadd.f32 %v575, %v576
  %v578 = vsel %vm547, %v569, 0.0
  %v579 = vadd.f32 %v577, %v578
  %v580 = vsel %vm547, %v570, 0.0
  %v581 = vadd.f32 %v579, %v580
  %v582 = vsel %vm547, %v571, 0.0
  %v583 = vadd.f32 %v581, %v582
  %v584 = vsel %vm547, %v572, 0.0
  %v585 = vadd.f32 %v583, %v584
  %v586 = vsel %vm547, %v573, 0.0
  %v587 = vadd.f32 %v585, %v586
  %v588 = vsel %vm547, %v574, 0.0
  %v589 = vadd.f32 %v587, %v588
  %590 = vadd.xlane.f32.xlu0 %v589
  %v591 = vpop.xlane.xlu0 %590
  %v592 = vmul.f32 %v591, %v565
  %v593 = vmul.f32 %v566, %v566
  %v594 = vsub.f32 %v592, %v593
  %v595 = vsub.f32 %v539, %v566
  %v596 = vsub.f32 %v540, %v566
  %v597 = vsub.f32 %v541, %v566
  %v598 = vsub.f32 %v542, %v566
  %v599 = vsub.f32 %v543, %v566
  %v600 = vsub.f32 %v544, %v566
  %v601 = vsub.f32 %v545, %v566
  %v602 = vsub.f32 %v546, %v566
  %v603 = vadd.f32 %v594, 1e-05
  %v604 = vrsqrt.pop %v603
  %v605 = vmul.f32 %v595, %v604
  %v606 = vmul.f32 %v596, %v604
  %v607 = vmul.f32 %v597, %v604
  %v608 = vmul.f32 %v598, %v604
  %v609 = vmul.f32 %v599, %v604
  %v610 = vmul.f32 %v600, %v604
  %v611 = vmul.f32 %v601, %v604
  %v612 = vmul.f32 %v602, %v604
  %v613 = vld [vmem:[%s7] sm:$0xff]
  %v615 = vlaneseq
  %v616 = vshrl.u32 %v615, 7
  %v617 = vsub.s32 0, %v616
  %v618 = vrot.slane %v613, %v617
  %v619 = vlaneseq
  %v620 = vshrl.u32 %v619, 7
  %v621 = vsub.s32 1, %v620
  %v622 = vrot.slane %v613, %v621
  %v623 = vlaneseq
  %v624 = vshrl.u32 %v623, 7
  %v625 = vsub.s32 2, %v624
  %v626 = vrot.slane %v613, %v625
  %v627 = vlaneseq
  %v628 = vshrl.u32 %v627, 7
  %v629 = vsub.s32 3, %v628
  %v630 = vrot.slane %v613, %v629
  %v631 = vlaneseq
  %v632 = vshrl.u32 %v631, 7
  %v633 = vsub.s32 4, %v632
  %v634 = vrot.slane %v613, %v633
  %v635 = vlaneseq
  %v636 = vshrl.u32 %v635, 7
  %v637 = vsub.s32 5, %v636
  %v638 = vrot.slane %v613, %v637
  %v639 = vlaneseq
  %v640 = vshrl.u32 %v639, 7
  %v641 = vsub.s32 6, %v640
  %v642 = vrot.slane %v613, %v641
  %v643 = vlaneseq
  %v644 = vshrl.u32 %v643, 7
  %v645 = vsub.s32 7, %v644
  %v646 = vrot.slane %v613, %v645
  %v655 = vmul.f32 %v605, %v618
  %v656 = vmul.f32 %v606, %v622
  %v657 = vmul.f32 %v607, %v626
  %v658 = vmul.f32 %v608, %v630
  %v659 = vmul.f32 %v609, %v634
  %v660 = vmul.f32 %v610, %v638
  %v661 = vmul.f32 %v611, %v642
  %v662 = vmul.f32 %v612, %v646
  %v663 = vld [vmem:[%s8] sm:$0xff]
  %v665 = vlaneseq
  %v666 = vshrl.u32 %v665, 7
  %v667 = vsub.s32 0, %v666
  %v668 = vrot.slane %v663, %v667
  %v669 = vlaneseq
  %v670 = vshrl.u32 %v669, 7
  %v671 = vsub.s32 1, %v670
  %v672 = vrot.slane %v663, %v671
  %v673 = vlaneseq
  %v674 = vshrl.u32 %v673, 7
  %v675 = vsub.s32 2, %v674
  %v676 = vrot.slane %v663, %v675
  %v677 = vlaneseq
  %v678 = vshrl.u32 %v677, 7
  %v679 = vsub.s32 3, %v678
  %v680 = vrot.slane %v663, %v679
  %v681 = vlaneseq
  %v682 = vshrl.u32 %v681, 7
  %v683 = vsub.s32 4, %v682
  %v684 = vrot.slane %v663, %v683
  %v685 = vlaneseq
  %v686 = vshrl.u32 %v685, 7
  %v687 = vsub.s32 5, %v686
  %v688 = vrot.slane %v663, %v687
  %v689 = vlaneseq
  %v690 = vshrl.u32 %v689, 7
  %v691 = vsub.s32 6, %v690
  %v692 = vrot.slane %v663, %v691
  %v693 = vlaneseq
  %v694 = vshrl.u32 %v693, 7
  %v695 = vsub.s32 7, %v694
  %v696 = vrot.slane %v663, %v695
  %v705 = vadd.f32 %v655, %v668
  %v706 = vadd.f32 %v656, %v672
  %v707 = vadd.f32 %v657, %v676
  %v708 = vadd.f32 %v658, %v680
  %v709 = vadd.f32 %v659, %v684
  %v710 = vadd.f32 %v660, %v688
  %v711 = vadd.f32 %v661, %v692
  %v712 = vadd.f32 %v662, %v696
  %v721 = vcombine.low %v705, %v706
  %v722 = vcombine.low %v707, %v708
  %v724 = vunpack.c.l.s4 1983009808
  %v725 = vunpack.c.0.s8 %v724
  %v726 = vlaneseq
  %v727 = vshrl.u32 %v726, 7
  %v728 = vsub.s32 %v725, %v727
  %v729 = vrot.slane %v721, %v728
  %v731 = vunpack.c.l.s4 1983009808
  %v732 = vunpack.c.0.s8 %v731
  %v733 = vlaneseq
  %v734 = vshrl.u32 %v733, 7
  %v735 = vsub.s32 %v732, %v734
  %v736 = vrot.slane %v722, %v735
  %v737 = vcombine.low %v729, %v736
  %v738 = vcombine.low %v709, %v710
  %v739 = vcombine.low %v711, %v712
  %v741 = vunpack.c.l.s4 1983009808
  %v742 = vunpack.c.0.s8 %v741
  %v743 = vlaneseq
  %v744 = vshrl.u32 %v743, 7
  %v745 = vsub.s32 %v742, %v744
  %v746 = vrot.slane %v738, %v745
  %v748 = vunpack.c.l.s4 1983009808
  %v749 = vunpack.c.0.s8 %v748
  %v750 = vlaneseq
  %v751 = vshrl.u32 %v750, 7
  %v752 = vsub.s32 %v749, %v751
  %v753 = vrot.slane %v739, %v752
  %v754 = vcombine.low %v746, %v753
  %757 = vst [vmem:[%s9] sm:$0xff] %v737
  %758 = vst [vmem:[%s9 + $0x8] sm:$0xff] %v754
  // Predicated region
  $region38: #{conv_layer_forward.2} parent=0 // pred_check
    _
  $region39: #{conv_layer_forward.2} parent=0 // pred_check_branch
    %760 = sbr.rel (0) target = $region41
  $region40: #{conv_layer_forward.2} parent=0 // pred_region
    _
  $region41: #{conv_layer_forward.2} parent=0 // pred_fallthru
    _
  // Predicated region
  $region42: #{conv_layer_forward.2} parent=0 // pred_check
    _
  $region43: #{conv_layer_forward.2} parent=0 // pred_check_branch
    %762 = sbr.rel (0) target = $region45
  $region44: #{conv_layer_forward.2} parent=0 // pred_region
    _
  $region45: #{conv_layer_forward.2} parent=0 // pred_fallthru
    _

// kernel: conv_layer_forward.3
$region0: #{conv_layer_forward.3}
  #allocation0 [shape = 'u32[]', space=smem, size = 0x4, offset = 0x4, fixed_abs, tag = 'smem constant byte address 0x4 - core index']
  #allocation1 [shape = 'u32[144,128]{1,0:T(1,128)}', space=vmem, size = 0x12000, scoped, tag = 'internal scratch']
  %s0 = inlined_call_operand.vmem [shape: f32[9,1,256], index: 0, kind: input, shape index: {}]
  %s1 = inlined_call_operand.vmem [shape: f32[2,4,256], index: 1, kind: input, shape index: {}]
  %s2 = inlined_call_operand.vmem [shape: f32[2,4,256], index: 2, kind: input, shape index: {}]
  %s3 = inlined_call_operand.vmem [shape: bf16[9,8,4], index: 3, kind: input, shape index: {}]
  %s4 = inlined_call_operand.vmem [shape: bf16[9,8,4], index: 4, kind: input, shape index: {}]
  %s5 = inlined_call_operand.vmem [shape: f32[8,1], index: 5, kind: input, shape index: {}]
  %s6 = inlined_call_operand.vmem [shape: f32[2,8,256], index: 6, kind: output, shape index: {}]
  %s7 = sld [smem:[#allocation0]]
  $region57: #{conv_layer_forward.3} parent=0
    _
  %s9 = ssub.s32 1, %s7
  %s10 = scalar_select 0, %s9, %s7
  loop: start=0, step=1, limit=4
  $region2: #{conv_layer_forward.3} parent=0 // loop_pre_header
    _
  $region3: #{conv_layer_forward.3} parent=0 // loop_header
    %s12 = sphi 0, %s16
    %p13 = scmp.ge.s32.totalorder %s12, 4
    %s20 = sphi 0, %s20
    %s22 = sphi 0, %s20
    %s23 = sphi 0, %s22
    %s37 = sphi 0, %s23
    %s43 = sphi 0, %s45
    %s46 = sphi 0, %s43
    %s47 = sphi 0, %s46
    %s63 = sphi 0, %s47
    %s69 = sphi 0, %s71
    %s72 = sphi 0, %s69
    %s73 = sphi 0, %s72
    %s89 = sphi 0, %s73
    %s93 = sphi 0, %s93
    %s95 = sphi 0, %s93
    %s96 = sphi 0, %s95
    %s110 = sphi 0, %s96
    %s114 = sphi 0, %s114
    %s116 = sphi 0, %s114
    %s117 = sphi 0, %s116
    %s131 = sphi 0, %s117
    %s135 = sphi 0, %s135
    %s137 = sphi 0, %s135
    %s138 = sphi 0, %s137
    %s152 = sphi 0, %s138
    %s158 = sphi 0, %s160
    %s161 = sphi 0, %s158
    %s162 = sphi 0, %s161
    %s178 = sphi 0, %s162
  $region4: #{conv_layer_forward.3} parent=0 // loop_header_branch
    %15 = sbr.rel (%p13) target = $region8
  $region5: #{conv_layer_forward.3} parent=0 // loop_body
    %s17 = ssub.s32 %s12, 1
    %s18 = ssub.s32 %s12, 2
    %s19 = sadd.s32 %s12, 1
    %s21 = sadd.s32 %s20, 1
    %p24 = scmp.eq.s32.totalorder %s12, 1
    %p25 = scmp.ne.s32.totalorder %s20, %s22
    %p26 = scmp.eq.s32.totalorder %s12, 0
    %p27 = por %p25, %p26
    %p28 = scmp.ne.s32.totalorder %s20, %s22
    %p29 = scmp.eq.s32.totalorder %s17, 1
    %p30 = por %p28, %p29
    %p31 = scmp.ne.s32.totalorder %s22, %s23
    %p32 = scmp.eq.s32.totalorder %s17, 0
    %p33 = por %p31, %p32
    %p34 = scmp.ne.s32.totalorder %s22, %s23
    %p35 = scmp.eq.s32.totalorder %s18, 1
    %p36 = por %p34, %p35
    %p38 = scmp.ne.s32.totalorder %s23, %s37
    %p39 = scmp.eq.s32.totalorder %s18, 0
    %p40 = por %p38, %p39
    %s41 = ssub.s32 %s12, %s19
    %p42 = scmp.eq.s32.totalorder %s41, 0
    %s44 = sadd.s32 %s43, 1
    %s45 = scalar_select %p42, %s43, %s44
    %p48 = pneg %p42
    %p49 = scmp.eq.s32.totalorder %s12, 1
    %p50 = por %p48, %p49
    %p51 = scmp.ne.s32.totalorder %s43, %s46
    %p52 = scmp.eq.s32.totalorder %s12, 0
    %p53 = por %p51, %p52
    %p54 = scmp.ne.s32.totalorder %s43, %s46
    %p55 = scmp.eq.s32.totalorder %s17, 1
    %p56 = por %p54, %p55
    %p57 = scmp.ne.s32.totalorder %s46, %s47
    %p58 = scmp.eq.s32.totalorder %s17, 0
    %p59 = por %p57, %p58
    %p60 = scmp.ne.s32.totalorder %s46, %s47
    %p61 = scmp.eq.s32.totalorder %s18, 1
    %p62 = por %p60, %p61
    %p64 = scmp.ne.s32.totalorder %s47, %s63
    %p65 = scmp.eq.s32.totalorder %s18, 0
    %p66 = por %p64, %p65
    %s67 = ssub.s32 %s12, %s19
    %p68 = scmp.eq.s32.totalorder %s67, 0
    %s70 = sadd.s32 %s69, 1
    %s71 = scalar_select %p68, %s69, %s70
    %p74 = pneg %p68
    %p75 = scmp.eq.s32.totalorder %s12, 1
    %p76 = por %p74, %p75
    %p77 = scmp.ne.s32.totalorder %s69, %s72
    %p78 = scmp.eq.s32.totalorder %s12, 0
    %p79 = por %p77, %p78
    %p80 = scmp.ne.s32.totalorder %s69, %s72
    %p81 = scmp.eq.s32.totalorder %s17, 1
    %p82 = por %p80, %p81
    %p83 = scmp.ne.s32.totalorder %s72, %s73
    %p84 = scmp.eq.s32.totalorder %s17, 0
    %p85 = por %p83, %p84
    %p86 = scmp.ne.s32.totalorder %s72, %s73
    %p87 = scmp.eq.s32.totalorder %s18, 1
    %p88 = por %p86, %p87
    %p90 = scmp.ne.s32.totalorder %s73, %s89
    %p91 = scmp.eq.s32.totalorder %s18, 0
    %p92 = por %p90, %p91
    %s94 = sadd.s32 %s93, 1
    %p97 = scmp.eq.s32.totalorder %s12, 1
    %p98 = scmp.ne.s32.totalorder %s93, %s95
    %p99 = scmp.eq.s32.totalorder %s12, 0
    %p100 = por %p98, %p99
    %p101 = scmp.ne.s32.totalorder %s93, %s95
    %p102 = scmp.eq.s32.totalorder %s17, 1
    %p103 = por %p101, %p102
    %p104 = scmp.ne.s32.totalorder %s95, %s96
    %p105 = scmp.eq.s32.totalorder %s17, 0
    %p106 = por %p104, %p105
    %p107 = scmp.ne.s32.totalorder %s95, %s96
    %p108 = scmp.eq.s32.totalorder %s18, 1
    %p109 = por %p107, %p108
    %p111 = scmp.ne.s32.totalorder %s96, %s110
    %p112 = scmp.eq.s32.totalorder %s18, 0
    %p113 = por %p111, %p112
    %s115 = sadd.s32 %s114, 1
    %p118 = scmp.eq.s32.totalorder %s12, 1
    %p119 = scmp.ne.s32.totalorder %s114, %s116
    %p120 = scmp.eq.s32.totalorder %s12, 0
    %p121 = por %p119, %p120
    %p122 = scmp.ne.s32.totalorder %s114, %s116
    %p123 = scmp.eq.s32.totalorder %s17, 1
    %p124 = por %p122, %p123
    %p125 = scmp.ne.s32.totalorder %s116, %s117
    %p126 = scmp.eq.s32.totalorder %s17, 0
    %p127 = por %p125, %p126
    %p128 = scmp.ne.s32.totalorder %s116, %s117
    %p129 = scmp.eq.s32.totalorder %s18, 1
    %p130 = por %p128, %p129
    %p132 = scmp.ne.s32.totalorder %s117, %s131
    %p133 = scmp.eq.s32.totalorder %s18, 0
    %p134 = por %p132, %p133
    %s136 = sadd.s32 %s135, 1
    %p139 = scmp.eq.s32.totalorder %s12, 1
    %p140 = scmp.ne.s32.totalorder %s135, %s137
    %p141 = scmp.eq.s32.totalorder %s12, 0
    %p142 = por %p140, %p141
    %p143 = scmp.ne.s32.totalorder %s135, %s137
    %p144 = scmp.eq.s32.totalorder %s17, 1
    %p145 = por %p143, %p144
    %p146 = scmp.ne.s32.totalorder %s137, %s138
    %p147 = scmp.eq.s32.totalorder %s17, 0
    %p148 = por %p146, %p147
    %p149 = scmp.ne.s32.totalorder %s137, %s138
    %p150 = scmp.eq.s32.totalorder %s18, 1
    %p151 = por %p149, %p150
    %p153 = scmp.ne.s32.totalorder %s138, %s152
    %p154 = scmp.eq.s32.totalorder %s18, 0
    %p155 = por %p153, %p154
    %s156 = ssub.s32 %s12, %s19
    %p157 = scmp.eq.s32.totalorder %s156, 0
    %s159 = sadd.s32 %s158, 1
    %s160 = scalar_select %p157, %s158, %s159
    %p163 = pneg %p157
    %p164 = scmp.eq.s32.totalorder %s12, 1
    %p165 = por %p163, %p164
    %p166 = scmp.ne.s32.totalorder %s158, %s161
    %p167 = scmp.eq.s32.totalorder %s12, 0
    %p168 = por %p166, %p167
    %p169 = scmp.ne.s32.totalorder %s158, %s161
    %p170 = scmp.eq.s32.totalorder %s17, 1
    %p171 = por %p169, %p170
    %p172 = scmp.ne.s32.totalorder %s161, %s162
    %p173 = scmp.eq.s32.totalorder %s17, 0
    %p174 = por %p172, %p173
    %p175 = scmp.ne.s32.totalorder %s161, %s162
    %p176 = scmp.eq.s32.totalorder %s18, 1
    %p177 = por %p175, %p176
    %p179 = scmp.ne.s32.totalorder %s162, %s178
    %p180 = scmp.eq.s32.totalorder %s18, 0
    %p181 = por %p179, %p180
    %p182 = scmp.le.s32.totalorder 1, %s12
    %p183 = scmp.lt.s32.totalorder %s12, 3
    %p184 = pnand %p182, %p183
    %p185 = pneg %p184
    // Predicated region
    $region9: #{conv_layer_forward.3} parent=5 // pred_check
      _
    $region10: #{conv_layer_forward.3} parent=5 // pred_check_branch
      %187 = sbr.rel (%p184) target = $region12
    $region11: #{conv_layer_forward.3} parent=5 // pred_region
      %s188 = ssub.s32 %s12, 1
      // Predicated region
      $region13: #{conv_layer_forward.3} parent=11 // pred_check
        %p189 = pneg %p33
      $region14: #{conv_layer_forward.3} parent=11 // pred_check_branch
        %191 = sbr.rel (%p189) target = $region16
      $region15: #{conv_layer_forward.3} parent=11 // pred_region
        _
      $region16: #{conv_layer_forward.3} parent=11 // pred_fallthru
        _
      // Predicated region
      $region17: #{conv_layer_forward.3} parent=11 // pred_check
        %p192 = pneg %p106
      $region18: #{conv_layer_forward.3} parent=11 // pred_check_branch
        %194 = sbr.rel (%p192) target = $region20
      $region19: #{conv_layer_forward.3} parent=11 // pred_region
        _
      $region20: #{conv_layer_forward.3} parent=11 // pred_fallthru
        _
      // Predicated region
      $region21: #{conv_layer_forward.3} parent=11 // pred_check
        %p195 = pneg %p127
      $region22: #{conv_layer_forward.3} parent=11 // pred_check_branch
        %197 = sbr.rel (%p195) target = $region24
      $region23: #{conv_layer_forward.3} parent=11 // pred_region
        _
      $region24: #{conv_layer_forward.3} parent=11 // pred_fallthru
        _
      // Predicated region
      $region25: #{conv_layer_forward.3} parent=11 // pred_check
        %p198 = pneg %p148
      $region26: #{conv_layer_forward.3} parent=11 // pred_check_branch
        %200 = sbr.rel (%p198) target = $region28
      $region27: #{conv_layer_forward.3} parent=11 // pred_region
        _
      $region28: #{conv_layer_forward.3} parent=11 // pred_fallthru
        _
    $region12: #{conv_layer_forward.3} parent=5 // pred_fallthru
      _
    %p201 = scmp.lt.s32.totalorder %s12, 2
    // Predicated region
    $region29: #{conv_layer_forward.3} parent=5 // pred_check
      %p202 = pneg %p201
    $region30: #{conv_layer_forward.3} parent=5 // pred_check_branch
      %204 = sbr.rel (%p202) target = $region32
    $region31: #{conv_layer_forward.3} parent=5 // pred_region
      // Predicated region
      $region33: #{conv_layer_forward.3} parent=31 // pred_check
        %p205 = pneg %p53
      $region34: #{conv_layer_forward.3} parent=31 // pred_check_branch
        %207 = sbr.rel (%p205) target = $region36
      $region35: #{conv_layer_forward.3} parent=31 // pred_region
        %p208 = scmp.lt.s32.totalorder %s12, 1
        %s209 = scalar_select %p208, %s12, 1
        %s210 = smul.addr %s209, 2
        %s211 = smul.addr %s210, 4
        %s212 = scalar_lea.vmem %s1, %s211
      $region36: #{conv_layer_forward.3} parent=31 // pred_fallthru
        _
      // Predicated region
      $region37: #{conv_layer_forward.3} parent=31 // pred_check
        %p213 = pneg %p79
      $region38: #{conv_layer_forward.3} parent=31 // pred_check_branch
        %215 = sbr.rel (%p213) target = $region40
      $region39: #{conv_layer_forward.3} parent=31 // pred_region
        %p216 = scmp.lt.s32.totalorder %s12, 1
        %s217 = scalar_select %p216, %s12, 1
        %s218 = smul.addr %s217, 2
        %s219 = smul.addr %s218, 4
        %s220 = scalar_lea.vmem %s2, %s219
      $region40: #{conv_layer_forward.3} parent=31 // pred_fallthru
        _
    $region32: #{conv_layer_forward.3} parent=5 // pred_fallthru
      _
    %p221 = scmp.le.s32.totalorder 1, %s12
    %p222 = scmp.lt.s32.totalorder %s12, 3
    %p223 = pnand %p221, %p222
    %p224 = pneg %p223
    // Predicated region
    $region41: #{conv_layer_forward.3} parent=5 // pred_check
      _
    $region42: #{conv_layer_forward.3} parent=5 // pred_check_branch
      %226 = sbr.rel (%p223) target = $region44
    $region43: #{conv_layer_forward.3} parent=5 // pred_region
      %s227 = ssub.s32 %s12, 1
      %p228 = pneg %p33
      %p229 = pneg %p30
      %p230 = scmp.lt.s32.totalorder %s17, 1
      %s231 = scalar_select %p230, %s17, 1
      %s232 = smul.addr %s231, 2
      %s233 = smul.addr %s232, 4
      %s234 = scalar_lea.vmem %s1, %s233
      %p235 = pneg %p59
      %p236 = pneg %p56
      %p237 = scmp.lt.s32.totalorder %s17, 1
      %s238 = scalar_select %p237, %s17, 1
      %s239 = smul.addr %s238, 2
      %s240 = smul.addr %s239, 4
      %s241 = scalar_lea.vmem %s2, %s240
      %p242 = pneg %p85
      %p243 = pneg %p82
      %p244 = pneg %p106
      %p245 = pneg %p103
      %p246 = pneg %p127
      %p247 = pneg %p124
      %p248 = pneg %p148
      %p249 = pneg %p145
      %p250 = pneg %p174
      %p251 = pneg %p171
      %p252 = scmp.lt.s32.totalorder %s17, 1
      %s253 = scalar_select %p252, %s17, 1
      %s254 = smul.addr %s253, 2
      %s255 = smul.addr %s254, 8
      %s256 = scalar_lea.vmem %s6, %s255
      %p257 = scmp.lt.s32.totalorder %s17, 1
      %s258 = scalar_select %p257, %s17, 1
      %s259 = smul.addr %s258, 2
      %s260 = smul.addr %s259, 4
      %s261 = scalar_lea.vmem %s1, %s260
      %p262 = scmp.lt.s32.totalorder %s17, 1
      %s263 = scalar_select %p262, %s17, 1
      %s264 = smul.addr %s263, 2
      %s265 = smul.addr %s264, 4
      %s266 = scalar_lea.vmem %s2, %s265
      %p267 = scmp.lt.s32.totalorder %s17, 1
      %s268 = scalar_select %p267, %s17, 1
      %s269 = smul.addr %s268, 2
      %s270 = smul.addr %s269, 8
      %s271 = scalar_lea.vmem %s6, %s270
      %v273 = vld [vmem:[%s261] sm:$0xff]
      %v274 = vld [vmem:[%s266] sm:$0xff]
      %v276 = vcombine.high %v273, %v273
      %278 = vrot.lane.b32.xlu0 %v273, 17
      %v279 = vpop.permute.xlu0 %278
      %280 = vrot.lane.b32.xlu0 %v276, 17
      %v281 = vpop.permute.xlu0 %280
      %v282 = vlaneseq
      %v283 = vand.u32 %v282, 127
      %vm284 = vcmp.lt.s32.totalorder %v283, 17
      %v285 = vsel %vm284, %v279, %v281
      %v286 = vsel %vm284, %v281, %v279
      %v288 = vcombine.high %v274, %v274
      %290 = vrot.lane.b32.xlu0 %v274, 17
      %v291 = vpop.permute.xlu0 %290
      %292 = vrot.lane.b32.xlu0 %v288, 17
      %v293 = vpop.permute.xlu0 %292
      %v294 = vsel %vm284, %v291, %v293
      %v295 = vsel %vm284, %v293, %v291
      %v296 = vld [vmem:[%s3] sm:$0xf]
      %v297 = vpack.c.bf16 %v286, %v286
      %v298 = vpack.c.bf16 %v285, %v285
      %v299 = vld [vmem:[%s4] sm:$0xf]
      %v300 = vpack.c.bf16 %v295, %v295
      %v301 = vpack.c.bf16 %v294, %v294
      %vm302 = vcmask 31744
      %v304 = vsel %vm302, %v299, 0
      %vm306 = vcmask 1041408
      %v308 = vsel %vm306, %v300, 0
      %v311 = vsel %vm306, %v301, 0
      %313 = vmatprep.subr.bf16.mxu0 %v311
      %314 = vmatpush1.bf16.msra.mxu0 %v308
      %315 = vmatprep.subr.bf16.mxu0 0
      %316 = vmatpush1.bf16.msra.mxu0 0
      %317 = vmatprep.subr.bf16.mxu0 0
      %318 = vmatpush1.bf16.msra.mxu0 0
      %319 = vmatprep.subr.bf16.mxu0 0
      %320 = vmatpush1.bf16.msra.mxu0 0
      %321 = vmatprep.subr.bf16.mxu0 0
      %322 = vmatpush1.bf16.msra.mxu0 0
      %323 = vmatprep.subr.bf16.mxu0 0
      %324 = vmatpush1.bf16.msra.mxu0 0
      %325 = vmatprep.subr.bf16.mxu0 0
      %326 = vmatpush1.bf16.msra.mxu0 0
      %327 = vmatprep.subr.bf16.mxu0 0
      %328 = vmatpush1.bf16.msra.mxu0 0
      %329 = vmatprep.subr.bf16.mxu0 0
      %330 = vmatpush1.bf16.msra.mxu0 0
      %331 = vmatprep.subr.bf16.mxu0 0
      %332 = vmatpush1.bf16.msra.mxu0 0
      %333 = vmatprep.subr.bf16.mxu0 0
      %334 = vmatpush1.bf16.msra.mxu0 0
      %335 = vmatprep.subr.bf16.mxu0 0
      %336 = vmatpush1.bf16.msra.mxu0 0
      %337 = vmatprep.subr.bf16.mxu0 0
      %338 = vmatpush1.bf16.msra.mxu0 0
      %339 = vmatprep.subr.bf16.mxu0 0
      %340 = vmatpush1.bf16.msra.mxu0 0
      %341 = vmatprep.subr.bf16.mxu0 0
      %342 = vmatpush1.bf16.msra.mxu0 0
      %343 = vmatprep.subr.bf16.mxu0 0
      %344 = vmatpush1.bf16.msra.mxu0 0
      %345 = vmatprep.mubr.bf16.mxu0 0
      %346 = vmatmul.mubr.bf16.gmra.mrb[0].mxu0 %v304
      %v347 = vpop.f32.mrb[0].mxu0
      %v348 = vadd.f32 0.0, %v347
      %v349 = vpop.f32.mrb[0].mxu0
      %v350 = vadd.f32 0.0, %v349
      %v351 = vpop.f32.mrb[0].mxu0
      %v352 = vpop.f32.mrb[0].mxu0
      %353 = vdwg.mxu0
      %v355 = vsel %vm302, %v296, 0
      %v358 = vsel %vm306, %v297, 0
      %v361 = vsel %vm306, %v298, 0
      %363 = vmatprep.subr.bf16.mxu0 %v361
      %364 = vmatpush1.bf16.msra.mxu0 %v358
      %365 = vmatprep.subr.bf16.mxu0 0
      %366 = vmatpush1.bf16.msra.mxu0 0
      %367 = vmatprep.subr.bf16.mxu0 0
      %368 = vmatpush1.bf16.msra.mxu0 0
      %369 = vmatprep.subr.bf16.mxu0 0
      %370 = vmatpush1.bf16.msra.mxu0 0
      %371 = vmatprep.subr.bf16.mxu0 0
      %372 = vmatpush1.bf16.msra.mxu0 0
      %373 = vmatprep.subr.bf16.mxu0 0
      %374 = vmatpush1.bf16.msra.mxu0 0
      %375 = vmatprep.subr.bf16.mxu0 0
      %376 = vmatpush1.bf16.msra.mxu0 0
      %377 = vmatprep.subr.bf16.mxu0 0
      %378 = vmatpush1.bf16.msra.mxu0 0
      %379 = vmatprep.subr.bf16.mxu0 0
      %380 = vmatpush1.bf16.msra.mxu0 0
      %381 = vmatprep.subr.bf16.mxu0 0
      %382 = vmatpush1.bf16.msra.mxu0 0
      %383 = vmatprep.subr.bf16.mxu0 0
      %384 = vmatpush1.bf16.msra.mxu0 0
      %385 = vmatprep.subr.bf16.mxu0 0
      %386 = vmatpush1.bf16.msra.mxu0 0
      %387 = vmatprep.subr.bf16.mxu0 0
      %388 = vmatpush1.bf16.msra.mxu0 0
      %389 = vmatprep.subr.bf16.mxu0 0
      %390 = vmatpush1.bf16.msra.mxu0 0
      %391 = vmatprep.subr.bf16.mxu0 0
      %392 = vmatpush1.bf16.msra.mxu0 0
      %393 = vmatprep.subr.bf16.mxu0 0
      %394 = vmatpush1.bf16.msra.mxu0 0
      %395 = vmatprep.mubr.bf16.mxu0 0
      %396 = vmatmul.mubr.bf16.gmra.mrb[0].mxu0 %v355
      %v397 = vpop.f32.mrb[0].mxu0
      %v398 = vadd.f32 %v348, %v397
      %v399 = vpop.f32.mrb[0].mxu0
      %v400 = vadd.f32 %v350, %v399
      %v401 = vpop.f32.mrb[0].mxu0
      %v402 = vpop.f32.mrb[0].mxu0
      %403 = vdwg.mxu0
      %v404 = vld [vmem:[%s0] sm:$0x3]
      %v406 = vlaneseq
      %v407 = vshrl.u32 %v406, 7
      %v408 = vsub.s32 0, %v407
      %v409 = vrot.slane %v404, %v408
      %v410 = vlaneseq
      %v411 = vshrl.u32 %v410, 7
      %v412 = vsub.s32 1, %v411
      %v413 = vrot.slane %v404, %v412
      %v416 = vmul.f32 %v398, %v409
      %v417 = vmul.f32 %v400, %v413
      %v418 = vadd.f32 %v416, 0.0
      %v419 = vadd.f32 %v417, 0.0
      %420 = vrot.lane.b32.xlu0 %v273, 16
      %v421 = vpop.permute.xlu0 %420
      %422 = vrot.lane.b32.xlu0 %v276, 16
      %v423 = vpop.permute.xlu0 %422
      %vm424 = vcmp.lt.s32.totalorder %v283, 16
      %v425 = vsel %vm424, %v421, %v423
      %v426 = vsel %vm424, %v423, %v421
      %427 = vrot.lane.b32.xlu0 %v274, 16
      %v428 = vpop.permute.xlu0 %427
      %429 = vrot.lane.b32.xlu0 %v288, 16
      %v430 = vpop.permute.xlu0 %429
      %v431 = vsel %vm424, %v428, %v430
      %v432 = vsel %vm424, %v430, %v428
      %s433 = scalar_lea.vmem %s3, 4
      %v434 = vld [vmem:[%s433] sm:$0xf]
      %v435 = vpack.c.bf16 %v426, %v426
      %v436 = vpack.c.bf16 %v425, %v425
      %s437 = scalar_lea.vmem %s4, 4
      %v438 = vld [vmem:[%s437] sm:$0xf]
      %v439 = vpack.c.bf16 %v432, %v432
      %v440 = vpack.c.bf16 %v431, %v431
      %v442 = vsel %vm302, %v438, 0
      %v445 = vsel %vm306, %v439, 0
      %v448 = vsel %vm306, %v440, 0
      %450 = vmatprep.subr.bf16.mxu0 %v448
      %451 = vmatpush1.bf16.msra.mxu0 %v445
      %452 = vmatprep.subr.bf16.mxu0 0
      %453 = vmatpush1.bf16.msra.mxu0 0
      %454 = vmatprep.subr.bf16.mxu0 0
      %455 = vmatpush1.bf16.msra.mxu0 0
      %456 = vmatprep.subr.bf16.mxu0 0
      %457 = vmatpush1.bf16.msra.mxu0 0
      %458 = vmatprep.subr.bf16.mxu0 0
      %459 = vmatpush1.bf16.msra.mxu0 0
      %460 = vmatprep.subr.bf16.mxu0 0
      %461 = vmatpush1.bf16.msra.mxu0 0
      %462 = vmatprep.subr.bf16.mxu0 0
      %463 = vmatpush1.bf16.msra.mxu0 0
      %464 = vmatprep.subr.bf16.mxu0 0
      %465 = vmatpush1.bf16.msra.mxu0 0
      %466 = vmatprep.subr.bf16.mxu0 0
      %467 = vmatpush1.bf16.msra.mxu0 0
      %468 = vmatprep.subr.bf16.mxu0 0
      %469 = vmatpush1.bf16.msra.mxu0 0
      %470 = vmatprep.subr.bf16.mxu0 0
      %471 = vmatpush1.bf16.msra.mxu0 0
      %472 = vmatprep.subr.bf16.mxu0 0
      %473 = vmatpush1.bf16.msra.mxu0 0
      %474 = vmatprep.subr.bf16.mxu0 0
      %475 = vmatpush1.bf16.msra.mxu0 0
      %476 = vmatprep.subr.bf16.mxu0 0
      %477 = vmatpush1.bf16.msra.mxu0 0
      %478 = vmatprep.subr.bf16.mxu0 0
      %479 = vmatpush1.bf16.msra.mxu0 0
      %480 = vmatprep.subr.bf16.mxu0 0
      %481 = vmatpush1.bf16.msra.mxu0 0
      %482 = vmatprep.mubr.bf16.mxu0 0
      %483 = vmatmul.mubr.bf16.gmra.mrb[0].mxu0 %v442
      %v484 = vpop.f32.mrb[0].mxu0
      %v485 = vadd.f32 0.0, %v484
      %v486 = vpop.f32.mrb[0].mxu0
      %v487 = vadd.f32 0.0, %v486
      %v488 = vpop.f32.mrb[0].mxu0
      %v489 = vpop.f32.mrb[0].mxu0
      %490 = vdwg.mxu0
      %v492 = vsel %vm302, %v434, 0
      %v495 = vsel %vm306, %v435, 0
      %v498 = vsel %vm306, %v436, 0
      %500 = vmatprep.subr.bf16.mxu0 %v498
      %501 = vmatpush1.bf16.msra.mxu0 %v495
      %502 = vmatprep.subr.bf16.mxu0 0
      %503 = vmatpush1.bf16.msra.mxu0 0
      %504 = vmatprep.subr.bf16.mxu0 0
      %505 = vmatpush1.bf16.msra.mxu0 0
      %506 = vmatprep.subr.bf16.mxu0 0
      %507 = vmatpush1.bf16.msra.mxu0 0
      %508 = vmatprep.subr.bf16.mxu0 0
      %509 = vmatpush1.bf16.msra.mxu0 0
      %510 = vmatprep.subr.bf16.mxu0 0
      %511 = vmatpush1.bf16.msra.mxu0 0
      %512 = vmatprep.subr.bf16.mxu0 0
      %513 = vmatpush1.bf16.msra.mxu0 0
      %514 = vmatprep.subr.bf16.mxu0 0
      %515 = vmatpush1.bf16.msra.mxu0 0
      %516 = vmatprep.subr.bf16.mxu0 0
      %517 = vmatpush1.bf16.msra.mxu0 0
      %518 = vmatprep.subr.bf16.mxu0 0
      %519 = vmatpush1.bf16.msra.mxu0 0
      %520 = vmatprep.subr.bf16.mxu0 0
      %521 = vmatpush1.bf16.msra.mxu0 0
      %522 = vmatprep.subr.bf16.mxu0 0
      %523 = vmatpush1.bf16.msra.mxu0 0
      %524 = vmatprep.subr.bf16.mxu0 0
      %525 = vmatpush1.bf16.msra.mxu0 0
      %526 = vmatprep.subr.bf16.mxu0 0
      %527 = vmatpush1.bf16.msra.mxu0 0
      %528 = vmatprep.subr.bf16.mxu0 0
      %529 = vmatpush1.bf16.msra.mxu0 0
      %530 = vmatprep.subr.bf16.mxu0 0
      %531 = vmatpush1.bf16.msra.mxu0 0
      %532 = vmatprep.mubr.bf16.mxu0 0
      %533 = vmatmul.mubr.bf16.gmra.mrb[0].mxu0 %v492
      %v534 = vpop.f32.mrb[0].mxu0
      %v535 = vadd.f32 %v485, %v534
      %v536 = vpop.f32.mrb[0].mxu0
      %v537 = vadd.f32 %v487, %v536
      %v538 = vpop.f32.mrb[0].mxu0
      %v539 = vpop.f32.mrb[0].mxu0
      %540 = vdwg.mxu0
      %s541 = scalar_lea.vmem %s0, 2
      %v542 = vld [vmem:[%s541] sm:$0x3]
      %v544 = vlaneseq
      %v545 = vshrl.u32 %v544, 7
      %v546 = vsub.s32 0, %v545
      %v547 = vrot.slane %v542, %v546
      %v548 = vlaneseq
      %v549 = vshrl.u32 %v548, 7
      %v550 = vsub.s32 1, %v549
      %v551 = vrot.slane %v542, %v550
      %v554 = vmul.f32 %v535, %v547
      %v555 = vmul.f32 %v537, %v551
      %v556 = vadd.f32 %v418, %v554
      %v557 = vadd.f32 %v419, %v555
      %558 = vrot.lane.b32.xlu0 %v273, 15
      %v559 = vpop.permute.xlu0 %558
      %560 = vrot.lane.b32.xlu0 %v276, 15
      %v561 = vpop.permute.xlu0 %560
      %vm562 = vcmp.lt.s32.totalorder %v283, 15
      %v563 = vsel %vm562, %v559, %v561
      %v564 = vsel %vm562, %v561, %v559
      %565 = vrot.lane.b32.xlu0 %v274, 15
      %v566 = vpop.permute.xlu0 %565
      %567 = vrot.lane.b32.xlu0 %v288, 15
      %v568 = vpop.permute.xlu0 %567
      %v569 = vsel %vm562, %v566, %v568
      %v570 = vsel %vm562, %v568, %v566
      %s571 = scalar_lea.vmem %s3, 8
      %v572 = vld [vmem:[%s571] sm:$0xf]
      %v573 = vpack.c.bf16 %v564, %v564
      %v574 = vpack.c.bf16 %v563, %v563
      %s575 = scalar_lea.vmem %s4, 8
      %v576 = vld [vmem:[%s575] sm:$0xf]
      %v577 = vpack.c.bf16 %v570, %v570
      %v578 = vpack.c.bf16 %v569, %v569
      %v580 = vsel %vm302, %v576, 0
      %v583 = vsel %vm306, %v577, 0
      %v586 = vsel %vm306, %v578, 0
      %588 = vmatprep.subr.bf16.mxu0 %v586
      %589 = vmatpush1.bf16.msra.mxu0 %v583
      %590 = vmatprep.subr.bf16.mxu0 0
      %591 = vmatpush1.bf16.msra.mxu0 0
      %592 = vmatprep.subr.bf16.mxu0 0
      %593 = vmatpush1.bf16.msra.mxu0 0
      %594 = vmatprep.subr.bf16.mxu0 0
      %595 = vmatpush1.bf16.msra.mxu0 0
      %596 = vmatprep.subr.bf16.mxu0 0
      %597 = vmatpush1.bf16.msra.mxu0 0
      %598 = vmatprep.subr.bf16.mxu0 0
      %599 = vmatpush1.bf16.msra.mxu0 0
      %600 = vmatprep.subr.bf16.mxu0 0
      %601 = vmatpush1.bf16.msra.mxu0 0
      %602 = vmatprep.subr.bf16.mxu0 0
      %603 = vmatpush1.bf16.msra.mxu0 0
      %604 = vmatprep.subr.bf16.mxu0 0
      %605 = vmatpush1.bf16.msra.mxu0 0
      %606 = vmatprep.subr.bf16.mxu0 0
      %607 = vmatpush1.bf16.msra.mxu0 0
      %608 = vmatprep.subr.bf16.mxu0 0
      %609 = vmatpush1.bf16.msra.mxu0 0
      %610 = vmatprep.subr.bf16.mxu0 0
      %611 = vmatpush1.bf16.msra.mxu0 0
      %612 = vmatprep.subr.bf16.mxu0 0
      %613 = vmatpush1.bf16.msra.mxu0 0
      %614 = vmatprep.subr.bf16.mxu0 0
      %615 = vmatpush1.bf16.msra.mxu0 0
      %616 = vmatprep.subr.bf16.mxu0 0
      %617 = vmatpush1.bf16.msra.mxu0 0
      %618 = vmatprep.subr.bf16.mxu0 0
      %619 = vmatpush1.bf16.msra.mxu0 0
      %620 = vmatprep.mubr.bf16.mxu0 0
      %621 = vmatmul.mubr.bf16.gmra.mrb[0].mxu0 %v580
      %v622 = vpop.f32.mrb[0].mxu0
      %v623 = vadd.f32 0.0, %v622
      %v624 = vpop.f32.mrb[0].mxu0
      %v625 = vadd.f32 0.0, %v624
      %v626 = vpop.f32.mrb[0].mxu0
      %v627 = vpop.f32.mrb[0].mxu0
      %628 = vdwg.mxu0
      %v630 = vsel %vm302, %v572, 0
      %v633 = vsel %vm306, %v573, 0
      %v636 = vsel %vm306, %v574, 0
      %638 = vmatprep.subr.bf16.mxu0 %v636
      %639 = vmatpush1.bf16.msra.mxu0 %v633
      %640 = vmatprep.subr.bf16.mxu0 0
      %641 = vmatpush1.bf16.msra.mxu0 0
      %642 = vmatprep.subr.bf16.mxu0 0
      %643 = vmatpush1.bf16.msra.mxu0 0
      %644 = vmatprep.subr.bf16.mxu0 0
      %645 = vmatpush1.bf16.msra.mxu0 0
      %646 = vmatprep.subr.bf16.mxu0 0
      %647 = vmatpush1.bf16.msra.mxu0 0
      %648 = vmatprep.subr.bf16.mxu0 0
      %649 = vmatpush1.bf16.msra.mxu0 0
      %650 = vmatprep.subr.bf16.mxu0 0
      %651 = vmatpush1.bf16.msra.mxu0 0
      %652 = vmatprep.subr.bf16.mxu0 0
      %653 = vmatpush1.bf16.msra.mxu0 0
      %654 = vmatprep.subr.bf16.mxu0 0
      %655 = vmatpush1.bf16.msra.mxu0 0
      %656 = vmatprep.subr.bf16.mxu0 0
      %657 = vmatpush1.bf16.msra.mxu0 0
      %658 = vmatprep.subr.bf16.mxu0 0
      %659 = vmatpush1.bf16.msra.mxu0 0
      %660 = vmatprep.subr.bf16.mxu0 0
      %661 = vmatpush1.bf16.msra.mxu0 0
      %662 = vmatprep.subr.bf16.mxu0 0
      %663 = vmatpush1.bf16.msra.mxu0 0
      %664 = vmatprep.subr.bf16.mxu0 0
      %665 = vmatpush1.bf16.msra.mxu0 0
      %666 = vmatprep.subr.bf16.mxu0 0
      %667 = vmatpush1.bf16.msra.mxu0 0
      %668 = vmatprep.subr.bf16.mxu0 0
      %669 = vmatpush1.bf16.msra.mxu0 0
      %670 = vmatprep.mubr.bf16.mxu0 0
      %671 = vmatmul.mubr.bf16.gmra.mrb[0].mxu0 %v630
      %v672 = vpop.f32.mrb[0].mxu0
      %v673 = vadd.f32 %v623, %v672
      %v674 = vpop.f32.mrb[0].mxu0
      %v675 = vadd.f32 %v625, %v674
      %v676 = vpop.f32.mrb[0].mxu0
      %v677 = vpop.f32.mrb[0].mxu0
      %678 = vdwg.mxu0
      %s679 = scalar_lea.vmem %s0, 4
      %v680 = vld [vmem:[%s679] sm:$0x3]
      %v682 = vlaneseq
      %v683 = vshrl.u32 %v682, 7
      %v684 = vsub.s32 0, %v683
      %v685 = vrot.slane %v680, %v684
      %v686 = vlaneseq
      %v687 = vshrl.u32 %v686, 7
      %v688 = vsub.s32 1, %v687
      %v689 = vrot.slane %v680, %v688
      %v692 = vmul.f32 %v673, %v685
      %v693 = vmul.f32 %v675, %v689
      %v694 = vadd.f32 %v556, %v692
      %v695 = vadd.f32 %v557, %v693
      %696 = vrot.lane.b32.xlu0 %v273, 1
      %v697 = vpop.permute.xlu0 %696
      %698 = vrot.lane.b32.xlu0 %v276, 1
      %v699 = vpop.permute.xlu0 %698
      %vm700 = vcmp.lt.s32.totalorder %v283, 1
      %v701 = vsel %vm700, %v697, %v699
      %v702 = vsel %vm700, %v699, %v697
      %703 = vrot.lane.b32.xlu0 %v274, 1
      %v704 = vpop.permute.xlu0 %703
      %705 = vrot.lane.b32.xlu0 %v288, 1
      %v706 = vpop.permute.xlu0 %705
      %v707 = vsel %vm700, %v704, %v706
      %v708 = vsel %vm700, %v706, %v704
      %s709 = scalar_lea.vmem %s3, 12
      %v710 = vld [vmem:[%s709] sm:$0xf]
      %v711 = vpack.c.bf16 %v702, %v702
      %v712 = vpack.c.bf16 %v701, %v701
      %s713 = scalar_lea.vmem %s4, 12
      %v714 = vld [vmem:[%s713] sm:$0xf]
      %v715 = vpack.c.bf16 %v708, %v708
      %v716 = vpack.c.bf16 %v707, %v707
      %v718 = vsel %vm302, %v714, 0
      %v721 = vsel %vm306, %v715, 0
      %v724 = vsel %vm306, %v716, 0
      %726 = vmatprep.subr.bf16.mxu0 %v724
      %727 = vmatpush1.bf16.msra.mxu0 %v721
      %728 = vmatprep.subr.bf16.mxu0 0
      %729 = vmatpush1.bf16.msra.mxu0 0
      %730 = vmatprep.subr.bf16.mxu0 0
      %731 = vmatpush1.bf16.msra.mxu0 0
      %732 = vmatprep.subr.bf16.mxu0 0
      %733 = vmatpush1.bf16.msra.mxu0 0
      %734 = vmatprep.subr.bf16.mxu0 0
      %735 = vmatpush1.bf16.msra.mxu0 0
      %736 = vmatprep.subr.bf16.mxu0 0
      %737 = vmatpush1.bf16.msra.mxu0 0
      %738 = vmatprep.subr.bf16.mxu0 0
      %739 = vmatpush1.bf16.msra.mxu0 0
      %740 = vmatprep.subr.bf16.mxu0 0
      %741 = vmatpush1.bf16.msra.mxu0 0
      %742 = vmatprep.subr.bf16.mxu0 0
      %743 = vmatpush1.bf16.msra.mxu0 0
      %744 = vmatprep.subr.bf16.mxu0 0
      %745 = vmatpush1.bf16.msra.mxu0 0
      %746 = vmatprep.subr.bf16.mxu0 0
      %747 = vmatpush1.bf16.msra.mxu0 0
      %748 = vmatprep.subr.bf16.mxu0 0
      %749 = vmatpush1.bf16.msra.mxu0 0
      %750 = vmatprep.subr.bf16.mxu0 0
      %751 = vmatpush1.bf16.msra.mxu0 0
      %752 = vmatprep.subr.bf16.mxu0 0
      %753 = vmatpush1.bf16.msra.mxu0 0
      %754 = vmatprep.subr.bf16.mxu0 0
      %755 = vmatpush1.bf16.msra.mxu0 0
      %756 = vmatprep.subr.bf16.mxu0 0
      %757 = vmatpush1.bf16.msra.mxu0 0
      %758 = vmatprep.mubr.bf16.mxu0 0
      %759 = vmatmul.mubr.bf16.gmra.mrb[0].mxu0 %v718
      %v760 = vpop.f32.mrb[0].mxu0
      %v761 = vadd.f32 0.0, %v760
      %v762 = vpop.f32.mrb[0].mxu0
      %v763 = vadd.f32 0.0, %v762
      %v764 = vpop.f32.mrb[0].mxu0
      %v765 = vpop.f32.mrb[0].mxu0
      %766 = vdwg.mxu0
      %v768 = vsel %vm302, %v710, 0
      %v771 = vsel %vm306, %v711, 0
      %v774 = vsel %vm306, %v712, 0
      %776 = vmatprep.subr.bf16.mxu0 %v774
      %777 = vmatpush1.bf16.msra.mxu0 %v771
      %778 = vmatprep.subr.bf16.mxu0 0
      %779 = vmatpush1.bf16.msra.mxu0 0
      %780 = vmatprep.subr.bf16.mxu0 0
      %781 = vmatpush1.bf16.msra.mxu0 0
      %782 = vmatprep.subr.bf16.mxu0 0
      %783 = vmatpush1.bf16.msra.mxu0 0
      %784 = vmatprep.subr.bf16.mxu0 0
      %785 = vmatpush1.bf16.msra.mxu0 0
      %786 = vmatprep.subr.bf16.mxu0 0
      %787 = vmatpush1.bf16.msra.mxu0 0
      %788 = vmatprep.subr.bf16.mxu0 0
      %789 = vmatpush1.bf16.msra.mxu0 0
      %790 = vmatprep.subr.bf16.mxu0 0
      %791 = vmatpush1.bf16.msra.mxu0 0
      %792 = vmatprep.subr.bf16.mxu0 0
      %793 = vmatpush1.bf16.msra.mxu0 0
      %794 = vmatprep.subr.bf16.mxu0 0
      %795 = vmatpush1.bf16.msra.mxu0 0
      %796 = vmatprep.subr.bf16.mxu0 0
      %797 = vmatpush1.bf16.msra.mxu0 0
      %798 = vmatprep.subr.bf16.mxu0 0
      %799 = vmatpush1.bf16.msra.mxu0 0
      %800 = vmatprep.subr.bf16.mxu0 0
      %801 = vmatpush1.bf16.msra.mxu0 0
      %802 = vmatprep.subr.bf16.mxu0 0
      %803 = vmatpush1.bf16.msra.mxu0 0
      %804 = vmatprep.subr.bf16.mxu0 0
      %805 = vmatpush1.bf16.msra.mxu0 0
      %806 = vmatprep.subr.bf16.mxu0 0
      %807 = vmatpush1.bf16.msra.mxu0 0
      %808 = vmatprep.mubr.bf16.mxu0 0
      %809 = vmatmul.mubr.bf16.gmra.mrb[0].mxu0 %v768
      %v810 = vpop.f32.mrb[0].mxu0
      %v811 = vadd.f32 %v761, %v810
      %v812 = vpop.f32.mrb[0].mxu0
      %v813 = vadd.f32 %v763, %v812
      %v814 = vpop.f32.mrb[0].mxu0
      %v815 = vpop.f32.mrb[0].mxu0
      %816 = vdwg.mxu0
      %s817 = scalar_lea.vmem %s0, 6
      %v818 = vld [vmem:[%s817] sm:$0x3]
      %v820 = vlaneseq
      %v821 = vshrl.u32 %v820, 7
      %v822 = vsub.s32 0, %v821
      %v823 = vrot.slane %v818, %v822
      %v824 = vlaneseq
      %v825 = vshrl.u32 %v824, 7
      %v826 = vsub.s32 1, %v825
      %v827 = vrot.slane %v818, %v826
      %v830 = vmul.f32 %v811, %v823
      %v831 = vmul.f32 %v813, %v827
      %v832 = vadd.f32 %v694, %v830
      %v833 = vadd.f32 %v695, %v831
      %s834 = scalar_lea.vmem %s3, 16
      %v835 = vld [vmem:[%s834] sm:$0xf]
      %v836 = vpack.c.bf16 %v273, %v273
      %v837 = vpack.c.bf16 %v276, %v276
      %s838 = scalar_lea.vmem %s4, 16
      %v839 = vld [vmem:[%s838] sm:$0xf]
      %v840 = vpack.c.bf16 %v274, %v274
      %v841 = vpack.c.bf16 %v288, %v288
      %v843 = vsel %vm302, %v839, 0
      %v846 = vsel %vm306, %v840, 0
      %v849 = vsel %vm306, %v841, 0
      %851 = vmatprep.subr.bf16.mxu0 %v849
      %852 = vmatpush1.bf16.msra.mxu0 %v846
      %853 = vmatprep.subr.bf16.mxu0 0
      %854 = vmatpush1.bf16.msra.mxu0 0
      %855 = vmatprep.subr.bf16.mxu0 0
      %856 = vmatpush1.bf16.msra.mxu0 0
      %857 = vmatprep.subr.bf16.mxu0 0
      %858 = vmatpush1.bf16.msra.mxu0 0
      %859 = vmatprep.subr.bf16.mxu0 0
      %860 = vmatpush1.bf16.msra.mxu0 0
      %861 = vmatprep.subr.bf16.mxu0 0
      %862 = vmatpush1.bf16.msra.mxu0 0
      %863 = vmatprep.subr.bf16.mxu0 0
      %864 = vmatpush1.bf16.msra.mxu0 0
      %865 = vmatprep.subr.bf16.mxu0 0
      %866 = vmatpush1.bf16.msra.mxu0 0
      %867 = vmatprep.subr.bf16.mxu0 0
      %868 = vmatpush1.bf16.msra.mxu0 0
      %869 = vmatprep.subr.bf16.mxu0 0
      %870 = vmatpush1.bf16.msra.mxu0 0
      %871 = vmatprep.subr.bf16.mxu0 0
      %872 = vmatpush1.bf16.msra.mxu0 0
      %873 = vmatprep.subr.bf16.mxu0 0
      %874 = vmatpush1.bf16.msra.mxu0 0
      %875 = vmatprep.subr.bf16.mxu0 0
      %876 = vmatpush1.bf16.msra.mxu0 0
      %877 = vmatprep.subr.bf16.mxu0 0
      %878 = vmatpush1.bf16.msra.mxu0 0
      %879 = vmatprep.subr.bf16.mxu0 0
      %880 = vmatpush1.bf16.msra.mxu0 0
      %881 = vmatprep.subr.bf16.mxu0 0
      %882 = vmatpush1.bf16.msra.mxu0 0
      %883 = vmatprep.mubr.bf16.mxu0 0
      %884 = vmatmul.mubr.bf16.gmra.mrb[0].mxu0 %v843
      %v885 = vpop.f32.mrb[0].mxu0
      %v886 = vadd.f32 0.0, %v885
      %v887 = vpop.f32.mrb[0].mxu0
      %v888 = vadd.f32 0.0, %v887
      %v889 = vpop.f32.mrb[0].mxu0
      %v890 = vpop.f32.mrb[0].mxu0
      %891 = vdwg.mxu0
      %v893 = vsel %vm302, %v835, 0
      %v896 = vsel %vm306, %v836, 0
      %v899 = vsel %vm306, %v837, 0
      %901 = vmatprep.subr.bf16.mxu0 %v899
      %902 = vmatpush1.bf16.msra.mxu0 %v896
      %903 = vmatprep.subr.bf16.mxu0 0
      %904 = vmatpush1.bf16.msra.mxu0 0
      %905 = vmatprep.subr.bf16.mxu0 0
      %906 = vmatpush1.bf16.msra.mxu0 0
      %907 = vmatprep.subr.bf16.mxu0 0
      %908 = vmatpush1.bf16.msra.mxu0 0
      %909 = vmatprep.subr.bf16.mxu0 0
      %910 = vmatpush1.bf16.msra.mxu0 0
      %911 = vmatprep.subr.bf16.mxu0 0
      %912 = vmatpush1.bf16.msra.mxu0 0
      %913 = vmatprep.subr.bf16.mxu0 0
      %914 = vmatpush1.bf16.msra.mxu0 0
      %915 = vmatprep.subr.bf16.mxu0 0
      %916 = vmatpush1.bf16.msra.mxu0 0
      %917 = vmatprep.subr.bf16.mxu0 0
      %918 = vmatpush1.bf16.msra.mxu0 0
      %919 = vmatprep.subr.bf16.mxu0 0
      %920 = vmatpush1.bf16.msra.mxu0 0
      %921 = vmatprep.subr.bf16.mxu0 0
      %922 = vmatpush1.bf16.msra.mxu0 0
      %923 = vmatprep.subr.bf16.mxu0 0
      %924 = vmatpush1.bf16.msra.mxu0 0
      %925 = vmatprep.subr.bf16.mxu0 0
      %926 = vmatpush1.bf16.msra.mxu0 0
      %927 = vmatprep.subr.bf16.mxu0 0
      %928 = vmatpush1.bf16.msra.mxu0 0
      %929 = vmatprep.subr.bf16.mxu0 0
      %930 = vmatpush1.bf16.msra.mxu0 0
      %931 = vmatprep.subr.bf16.mxu0 0
      %932 = vmatpush1.bf16.msra.mxu0 0
      %933 = vmatprep.mubr.bf16.mxu0 0
      %934 = vmatmul.mubr.bf16.gmra.mrb[0].mxu0 %v893
      %v935 = vpop.f32.mrb[0].mxu0
      %v936 = vadd.f32 %v886, %v935
      %v937 = vpop.f32.mrb[0].mxu0
      %v938 = vadd.f32 %v888, %v937
      %v939 = vpop.f32.mrb[0].mxu0
      %v940 = vpop.f32.mrb[0].mxu0
      %941 = vdwg.mxu0
      %s942 = scalar_lea.vmem %s0, 8
      %v943 = vld [vmem:[%s942] sm:$0x3]
      %v945 = vlaneseq
      %v946 = vshrl.u32 %v945, 7
      %v947 = vsub.s32 0, %v946
      %v948 = vrot.slane %v943, %v947
      %v949 = vlaneseq
      %v950 = vshrl.u32 %v949, 7
      %v951 = vsub.s32 1, %v950
      %v952 = vrot.slane %v943, %v951
      %v955 = vmul.f32 %v936, %v948
      %v956 = vmul.f32 %v938, %v952
      %v957 = vadd.f32 %v832, %v955
      %v958 = vadd.f32 %v833, %v956
      %959 = vrot.lane.b32.xlu0 %v273, 127
      %v960 = vpop.permute.xlu0 %959
      %961 = vrot.lane.b32.xlu0 %v276, 127
      %v962 = vpop.permute.xlu0 %961
      %vm963 = vcmp.lt.s32.totalorder %v283, 127
      %v964 = vsel %vm963, %v960, %v962
      %v965 = vsel %vm963, %v962, %v960
      %966 = vrot.lane.b32.xlu0 %v274, 127
      %v967 = vpop.permute.xlu0 %966
      %968 = vrot.lane.b32.xlu0 %v288, 127
      %v969 = vpop.permute.xlu0 %968
      %v970 = vsel %vm963, %v967, %v969
      %v971 = vsel %vm963, %v969, %v967
      %s972 = scalar_lea.vmem %s3, 20
      %v973 = vld [vmem:[%s972] sm:$0xf]
      %v974 = vpack.c.bf16 %v964, %v964
      %v975 = vpack.c.bf16 %v965, %v965
      %s976 = scalar_lea.vmem %s4, 20
      %v977 = vld [vmem:[%s976] sm:$0xf]
      %v978 = vpack.c.bf16 %v970, %v970
      %v979 = vpack.c.bf16 %v971, %v971
      %v981 = vsel %vm302, %v977, 0
      %v984 = vsel %vm306, %v978, 0
      %v987 = vsel %vm306, %v979, 0
      %989 = vmatprep.subr.bf16.mxu0 %v987
      %990 = vmatpush1.bf16.msra.mxu0 %v984
      %991 = vmatprep.subr.bf16.mxu0 0
      %992 = vmatpush1.bf16.msra.mxu0 0
      %993 = vmatprep.subr.bf16.mxu0 0
      %994 = vmatpush1.bf16.msra.mxu0 0
      %995 = vmatprep.subr.bf16.mxu0 0
      %996 = vmatpush1.bf16.msra.mxu0 0
      %997 = vmatprep.subr.bf16.mxu0 0
      %998 = vmatpush1.bf16.msra.mxu0 0
      %999 = vmatprep.subr.bf16.mxu0 0
      %1000 = vmatpush1.bf16.msra.mxu0 0
      %1001 = vmatprep.subr.bf16.mxu0 0
      %1002 = vmatpush1.bf16.msra.mxu0 0
      %1003 = vmatprep.subr.bf16.mxu0 0
      %1004 = vmatpush1.bf16.msra.mxu0 0
      %1005 = vmatprep.subr.bf16.mxu0 0
      %1006 = vmatpush1.bf16.msra.mxu0 0
      %1007 = vmatprep.subr.bf16.mxu0 0
      %1008 = vmatpush1.bf16.msra.mxu0 0
      %1009 = vmatprep.subr.bf16.mxu0 0
      %1010 = vmatpush1.bf16.msra.mxu0 0
      %1011 = vmatprep.subr.bf16.mxu0 0
      %1012 = vmatpush1.bf16.msra.mxu0 0
      %1013 = vmatprep.subr.bf16.mxu0 0
      %1014 = vmatpush1.bf16.msra.mxu0 0
      %1015 = vmatprep.subr.bf16.mxu0 0
      %1016 = vmatpush1.bf16.msra.mxu0 0
      %1017 = vmatprep.subr.bf16.mxu0 0
      %1018 = vmatpush1.bf16.msra.mxu0 0
      %1019 = vmatprep.subr.bf16.mxu0 0
      %1020 = vmatpush1.bf16.msra.mxu0 0
      %1021 = vmatprep.mubr.bf16.mxu0 0
      %1022 = vmatmul.mubr.bf16.gmra.mrb[0].mxu0 %v981
      %v1023 = vpop.f32.mrb[0].mxu0
      %v1024 = vadd.f32 0.0, %v1023
      %v1025 = vpop.f32.mrb[0].mxu0
      %v1026 = vadd.f32 0.0, %v1025
      %v1027 = vpop.f32.mrb[0].mxu0
      %v1028 = vpop.f32.mrb[0].mxu0
      %1029 = vdwg.mxu0
      %v1031 = vsel %vm302, %v973, 0
      %v1034 = vsel %vm306, %v974, 0
      %v1037 = vsel %vm306, %v975, 0
      %1039 = vmatprep.subr.bf16.mxu0 %v1037
      %1040 = vmatpush1.bf16.msra.mxu0 %v1034
      %1041 = vmatprep.subr.bf16.mxu0 0
      %1042 = vmatpush1.bf16.msra.mxu0 0
      %1043 = vmatprep.subr.bf16.mxu0 0
      %1044 = vmatpush1.bf16.msra.mxu0 0
      %1045 = vmatprep.subr.bf16.mxu0 0
      %1046 = vmatpush1.bf16.msra.mxu0 0
      %1047 = vmatprep.subr.bf16.mxu0 0
      %1048 = vmatpush1.bf16.msra.mxu0 0
      %1049 = vmatprep.subr.bf16.mxu0 0
      %1050 = vmatpush1.bf16.msra.mxu0 0
      %1051 = vmatprep.subr.bf16.mxu0 0
      %1052 = vmatpush1.bf16.msra.mxu0 0
      %1053 = vmatprep.subr.bf16.mxu0 0
      %1054 = vmatpush1.bf16.msra.mxu0 0
      %1055 = vmatprep.subr.bf16.mxu0 0
      %1056 = vmatpush1.bf16.msra.mxu0 0
      %1057 = vmatprep.subr.bf16.mxu0 0
      %1058 = vmatpush1.bf16.msra.mxu0 0
      %1059 = vmatprep.subr.bf16.mxu0 0
      %1060 = vmatpush1.bf16.msra.mxu0 0
      %1061 = vmatprep.subr.bf16.mxu0 0
      %1062 = vmatpush1.bf16.msra.mxu0 0
      %1063 = vmatprep.subr.bf16.mxu0 0
      %1064 = vmatpush1.bf16.msra.mxu0 0
      %1065 = vmatprep.subr.bf16.mxu0 0
      %1066 = vmatpush1.bf16.msra.mxu0 0
      %1067 = vmatprep.subr.bf16.mxu0 0
      %1068 = vmatpush1.bf16.msra.mxu0 0
      %1069 = vmatprep.subr.bf16.mxu0 0
      %1070 = vmatpush1.bf16.msra.mxu0 0
      %1071 = vmatprep.mubr.bf16.mxu0 0
      %1072 = vmatmul.mubr.bf16.gmra.mrb[0].mxu0 %v1031
      %v1073 = vpop.f32.mrb[0].mxu0
      %v1074 = vadd.f32 %v1024, %v1073
      %v1075 = vpop.f32.mrb[0].mxu0
      %v1076 = vadd.f32 %v1026, %v1075
      %v1077 = vpop.f32.mrb[0].mxu0
      %v1078 = vpop.f32.mrb[0].mxu0
      %1079 = vdwg.mxu0
      %s1080 = scalar_lea.vmem %s0, 10
      %v1081 = vld [vmem:[%s1080] sm:$0x3]
      %v1083 = vlaneseq
      %v1084 = vshrl.u32 %v1083, 7
      %v1085 = vsub.s32 0, %v1084
      %v1086 = vrot.slane %v1081, %v1085
      %v1087 = vlaneseq
      %v1088 = vshrl.u32 %v1087, 7
      %v1089 = vsub.s32 1, %v1088
      %v1090 = vrot.slane %v1081, %v1089
      %v1093 = vmul.f32 %v1074, %v1086
      %v1094 = vmul.f32 %v1076, %v1090
      %v1095 = vadd.f32 %v957, %v1093
      %v1096 = vadd.f32 %v958, %v1094
      %1097 = vrot.lane.b32.xlu0 %v273, 113
      %v1098 = vpop.permute.xlu0 %1097
      %1099 = vrot.lane.b32.xlu0 %v276, 113
      %v1100 = vpop.permute.xlu0 %1099
      %vm1101 = vcmp.lt.s32.totalorder %v283, 113
      %v1102 = vsel %vm1101, %v1098, %v1100
      %v1103 = vsel %vm1101, %v1100, %v1098
      %1104 = vrot.lane.b32.xlu0 %v274, 113
      %v1105 = vpop.permute.xlu0 %1104
      %1106 = vrot.lane.b32.xlu0 %v288, 113
      %v1107 = vpop.permute.xlu0 %1106
      %v1108 = vsel %vm1101, %v1105, %v1107
      %v1109 = vsel %vm1101, %v1107, %v1105
      %s1110 = scalar_lea.vmem %s3, 24
      %v1111 = vld [vmem:[%s1110] sm:$0xf]
      %v1112 = vpack.c.bf16 %v1102, %v1102
      %v1113 = vpack.c.bf16 %v1103, %v1103
      %s1114 = scalar_lea.vmem %s4, 24
      %v1115 = vld [vmem:[%s1114] sm:$0xf]
      %v1116 = vpack.c.bf16 %v1108, %v1108
      %v1117 = vpack.c.bf16 %v1109, %v1109
      %v1119 = vsel %vm302, %v1115, 0
      %v1122 = vsel %vm306, %v1116, 0
      %v1125 = vsel %vm306, %v1117, 0
      %1127 = vmatprep.subr.bf16.mxu0 %v1125
      %1128 = vmatpush1.bf16.msra.mxu0 %v1122
      %1129 = vmatprep.subr.bf16.mxu0 0
      %1130 = vmatpush1.bf16.msra.mxu0 0
      %1131 = vmatprep.subr.bf16.mxu0 0
      %1132 = vmatpush1.bf16.msra.mxu0 0
      %1133 = vmatprep.subr.bf16.mxu0 0
      %1134 = vmatpush1.bf16.msra.mxu0 0
      %1135 = vmatprep.subr.bf16.mxu0 0
      %1136 = vmatpush1.bf16.msra.mxu0 0
      %1137 = vmatprep.subr.bf16.mxu0 0
      %1138 = vmatpush1.bf16.msra.mxu0 0
      %1139 = vmatprep.subr.bf16.mxu0 0
      %1140 = vmatpush1.bf16.msra.mxu0 0
      %1141 = vmatprep.subr.bf16.mxu0 0
      %1142 = vmatpush1.bf16.msra.mxu0 0
      %1143 = vmatprep.subr.bf16.mxu0 0
      %1144 = vmatpush1.bf16.msra.mxu0 0
      %1145 = vmatprep.subr.bf16.mxu0 0
      %1146 = vmatpush1.bf16.msra.mxu0 0
      %1147 = vmatprep.subr.bf16.mxu0 0
      %1148 = vmatpush1.bf16.msra.mxu0 0
      %1149 = vmatprep.subr.bf16.mxu0 0
      %1150 = vmatpush1.bf16.msra.mxu0 0
      %1151 = vmatprep.subr.bf16.mxu0 0
      %1152 = vmatpush1.bf16.msra.mxu0 0
      %1153 = vmatprep.subr.bf16.mxu0 0
      %1154 = vmatpush1.bf16.msra.mxu0 0
      %1155 = vmatprep.subr.bf16.mxu0 0
      %1156 = vmatpush1.bf16.msra.mxu0 0
      %1157 = vmatprep.subr.bf16.mxu0 0
      %1158 = vmatpush1.bf16.msra.mxu0 0
      %1159 = vmatprep.mubr.bf16.mxu0 0
      %1160 = vmatmul.mubr.bf16.gmra.mrb[0].mxu0 %v1119
      %v1161 = vpop.f32.mrb[0].mxu0
      %v1162 = vadd.f32 0.0, %v1161
      %v1163 = vpop.f32.mrb[0].mxu0
      %v1164 = vadd.f32 0.0, %v1163
      %v1165 = vpop.f32.mrb[0].mxu0
      %v1166 = vpop.f32.mrb[0].mxu0
      %1167 = vdwg.mxu0
      %v1169 = vsel %vm302, %v1111, 0
      %v1172 = vsel %vm306, %v1112, 0
      %v1175 = vsel %vm306, %v1113, 0
      %1177 = vmatprep.subr.bf16.mxu0 %v1175
      %1178 = vmatpush1.bf16.msra.mxu0 %v1172
      %1179 = vmatprep.subr.bf16.mxu0 0
      %1180 = vmatpush1.bf16.msra.mxu0 0
      %1181 = vmatprep.subr.bf16.mxu0 0
      %1182 = vmatpush1.bf16.msra.mxu0 0
      %1183 = vmatprep.subr.bf16.mxu0 0
      %1184 = vmatpush1.bf16.msra.mxu0 0
      %1185 = vmatprep.subr.bf16.mxu0 0
      %1186 = vmatpush1.bf16.msra.mxu0 0
      %1187 = vmatprep.subr.bf16.mxu0 0
      %1188 = vmatpush1.bf16.msra.mxu0 0
      %1189 = vmatprep.subr.bf16.mxu0 0
      %1190 = vmatpush1.bf16.msra.mxu0 0
      %1191 = vmatprep.subr.bf16.mxu0 0
      %1192 = vmatpush1.bf16.msra.mxu0 0
      %1193 = vmatprep.subr.bf16.mxu0 0
      %1194 = vmatpush1.bf16.msra.mxu0 0
      %1195 = vmatprep.subr.bf16.mxu0 0
      %1196 = vmatpush1.bf16.msra.mxu0 0
      %1197 = vmatprep.subr.bf16.mxu0 0
      %1198 = vmatpush1.bf16.msra.mxu0 0
      %1199 = vmatprep.subr.bf16.mxu0 0
      %1200 = vmatpush1.bf16.msra.mxu0 0
      %1201 = vmatprep.subr.bf16.mxu0 0
      %1202 = vmatpush1.bf16.msra.mxu0 0
      %1203 = vmatprep.subr.bf16.mxu0 0
      %1204 = vmatpush1.bf16.msra.mxu0 0
      %1205 = vmatprep.subr.bf16.mxu0 0
      %1206 = vmatpush1.bf16.msra.mxu0 0
      %1207 = vmatprep.subr.bf16.mxu0 0
      %1208 = vmatpush1.bf16.msra.mxu0 0
      %1209 = vmatprep.mubr.bf16.mxu0 0
      %1210 = vmatmul.mubr.bf16.gmra.mrb[0].mxu0 %v1169
      %v1211 = vpop.f32.mrb[0].mxu0
      %v1212 = vadd.f32 %v1162, %v1211
      %v1213 = vpop.f32.mrb[0].mxu0
      %v1214 = vadd.f32 %v1164, %v1213
      %v1215 = vpop.f32.mrb[0].mxu0
      %v1216 = vpop.f32.mrb[0].mxu0
      %1217 = vdwg.mxu0
      %s1218 = scalar_lea.vmem %s0, 12
      %v1219 = vld [vmem:[%s1218] sm:$0x3]
      %v1221 = vlaneseq
      %v1222 = vshrl.u32 %v1221, 7
      %v1223 = vsub.s32 0, %v1222
      %v1224 = vrot.slane %v1219, %v1223
      %v1225 = vlaneseq
      %v1226 = vshrl.u32 %v1225, 7
      %v1227 = vsub.s32 1, %v1226
      %v1228 = vrot.slane %v1219, %v1227
      %v1231 = vmul.f32 %v1212, %v1224
      %v1232 = vmul.f32 %v1214, %v1228
      %v1233 = vadd.f32 %v1095, %v1231
      %v1234 = vadd.f32 %v1096, %v1232
      %1235 = vrot.lane.b32.xlu0 %v273, 112
      %v1236 = vpop.permute.xlu0 %1235
      %1237 = vrot.lane.b32.xlu0 %v276, 112
      %v1238 = vpop.permute.xlu0 %1237
      %vm1239 = vcmp.lt.s32.totalorder %v283, 112
      %v1240 = vsel %vm1239, %v1236, %v1238
      %v1241 = vsel %vm1239, %v1238, %v1236
      %1242 = vrot.lane.b32.xlu0 %v274, 112
      %v1243 = vpop.permute.xlu0 %1242
      %1244 = vrot.lane.b32.xlu0 %v288, 112
      %v1245 = vpop.permute.xlu0 %1244
      %v1246 = vsel %vm1239, %v1243, %v1245
      %v1247 = vsel %vm1239, %v1245, %v1243
      %s1248 = scalar_lea.vmem %s3, 28
      %v1249 = vld [vmem:[%s1248] sm:$0xf]
      %v1250 = vpack.c.bf16 %v1240, %v1240
      %v1251 = vpack.c.bf16 %v1241, %v1241
      %s1252 = scalar_lea.vmem %s4, 28
      %v1253 = vld [vmem:[%s1252] sm:$0xf]
      %v1254 = vpack.c.bf16 %v1246, %v1246
      %v1255 = vpack.c.bf16 %v1247, %v1247
      %v1257 = vsel %vm302, %v1253, 0
      %v1260 = vsel %vm306, %v1254, 0
      %v1263 = vsel %vm306, %v1255, 0
      %1265 = vmatprep.subr.bf16.mxu0 %v1263
      %1266 = vmatpush1.bf16.msra.mxu0 %v1260
      %1267 = vmatprep.subr.bf16.mxu0 0
      %1268 = vmatpush1.bf16.msra.mxu0 0
      %1269 = vmatprep.subr.bf16.mxu0 0
      %1270 = vmatpush1.bf16.msra.mxu0 0
      %1271 = vmatprep.subr.bf16.mxu0 0
      %1272 = vmatpush1.bf16.msra.mxu0 0
      %1273 = vmatprep.subr.bf16.mxu0 0
      %1274 = vmatpush1.bf16.msra.mxu0 0
      %1275 = vmatprep.subr.bf16.mxu0 0
      %1276 = vmatpush1.bf16.msra.mxu0 0
      %1277 = vmatprep.subr.bf16.mxu0 0
      %1278 = vmatpush1.bf16.msra.mxu0 0
      %1279 = vmatprep.subr.bf16.mxu0 0
      %1280 = vmatpush1.bf16.msra.mxu0 0
      %1281 = vmatprep.subr.bf16.mxu0 0
      %1282 = vmatpush1.bf16.msra.mxu0 0
      %1283 = vmatprep.subr.bf16.mxu0 0
      %1284 = vmatpush1.bf16.msra.mxu0 0
      %1285 = vmatprep.subr.bf16.mxu0 0
      %1286 = vmatpush1.bf16.msra.mxu0 0
      %1287 = vmatprep.subr.bf16.mxu0 0
      %1288 = vmatpush1.bf16.msra.mxu0 0
      %1289 = vmatprep.subr.bf16.mxu0 0
      %1290 = vmatpush1.bf16.msra.mxu0 0
      %1291 = vmatprep.subr.bf16.mxu0 0
      %1292 = vmatpush1.bf16.msra.mxu0 0
      %1293 = vmatprep.subr.bf16.mxu0 0
      %1294 = vmatpush1.bf16.msra.mxu0 0
      %1295 = vmatprep.subr.bf16.mxu0 0
      %1296 = vmatpush1.bf16.msra.mxu0 0
      %1297 = vmatprep.mubr.bf16.mxu0 0
      %1298 = vmatmul.mubr.bf16.gmra.mrb[0].mxu0 %v1257
      %v1299 = vpop.f32.mrb[0].mxu0
      %v1300 = vadd.f32 0.0, %v1299
      %v1301 = vpop.f32.mrb[0].mxu0
      %v1302 = vadd.f32 0.0, %v1301
      %v1303 = vpop.f32.mrb[0].mxu0
      %v1304 = vpop.f32.mrb[0].mxu0
      %1305 = vdwg.mxu0
      %v1307 = vsel %vm302, %v1249, 0
      %v1310 = vsel %vm306, %v1250, 0
      %v1313 = vsel %vm306, %v1251, 0
      %1315 = vmatprep.subr.bf16.mxu0 %v1313
      %1316 = vmatpush1.bf16.msra.mxu0 %v1310
      %1317 = vmatprep.subr.bf16.mxu0 0
      %1318 = vmatpush1.bf16.msra.mxu0 0
      %1319 = vmatprep.subr.bf16.mxu0 0
      %1320 = vmatpush1.bf16.msra.mxu0 0
      %1321 = vmatprep.subr.bf16.mxu0 0
      %1322 = vmatpush1.bf16.msra.mxu0 0
      %1323 = vmatprep.subr.bf16.mxu0 0
      %1324 = vmatpush1.bf16.msra.mxu0 0
      %1325 = vmatprep.subr.bf16.mxu0 0
      %1326 = vmatpush1.bf16.msra.mxu0 0
      %1327 = vmatprep.subr.bf16.mxu0 0
      %1328 = vmatpush1.bf16.msra.mxu0 0
      %1329 = vmatprep.subr.bf16.mxu0 0
      %1330 = vmatpush1.bf16.msra.mxu0 0
      %1331 = vmatprep.subr.bf16.mxu0 0
      %1332 = vmatpush1.bf16.msra.mxu0 0
      %1333 = vmatprep.subr.bf16.mxu0 0
      %1334 = vmatpush1.bf16.msra.mxu0 0
      %1335 = vmatprep.subr.bf16.mxu0 0
      %1336 = vmatpush1.bf16.msra.mxu0 0
      %1337 = vmatprep.subr.bf16.mxu0 0
      %1338 = vmatpush1.bf16.msra.mxu0 0
      %1339 = vmatprep.subr.bf16.mxu0 0
      %1340 = vmatpush1.bf16.msra.mxu0 0
      %1341 = vmatprep.subr.bf16.mxu0 0
      %1342 = vmatpush1.bf16.msra.mxu0 0
      %1343 = vmatprep.subr.bf16.mxu0 0
      %1344 = vmatpush1.bf16.msra.mxu0 0
      %1345 = vmatprep.subr.bf16.mxu0 0
      %1346 = vmatpush1.bf16.msra.mxu0 0
      %1347 = vmatprep.mubr.bf16.mxu0 0
      %1348 = vmatmul.mubr.bf16.gmra.mrb[0].mxu0 %v1307
      %v1349 = vpop.f32.mrb[0].mxu0
      %v1350 = vadd.f32 %v1300, %v1349
      %v1351 = vpop.f32.mrb[0].mxu0
      %v1352 = vadd.f32 %v1302, %v1351
      %v1353 = vpop.f32.mrb[0].mxu0
      %v1354 = vpop.f32.mrb[0].mxu0
      %1355 = vdwg.mxu0
      %s1356 = scalar_lea.vmem %s0, 14
      %v1357 = vld [vmem:[%s1356] sm:$0x3]
      %v1359 = vlaneseq
      %v1360 = vshrl.u32 %v1359, 7
      %v1361 = vsub.s32 0, %v1360
      %v1362 = vrot.slane %v1357, %v1361
      %v1363 = vlaneseq
      %v1364 = vshrl.u32 %v1363, 7
      %v1365 = vsub.s32 1, %v1364
      %v1366 = vrot.slane %v1357, %v1365
      %v1369 = vmul.f32 %v1350, %v1362
      %v1370 = vmul.f32 %v1352, %v1366
      %v1371 = vadd.f32 %v1233, %v1369
      %v1372 = vadd.f32 %v1234, %v1370
      %1373 = vrot.lane.b32.xlu0 %v273, 111
      %v1374 = vpop.permute.xlu0 %1373
      %1375 = vrot.lane.b32.xlu0 %v276, 111
      %v1376 = vpop.permute.xlu0 %1375
      %vm1377 = vcmp.lt.s32.totalorder %v283, 111
      %v1378 = vsel %vm1377, %v1374, %v1376
      %v1379 = vsel %vm1377, %v1376, %v1374
      %1380 = vrot.lane.b32.xlu0 %v274, 111
      %v1381 = vpop.permute.xlu0 %1380
      %1382 = vrot.lane.b32.xlu0 %v288, 111
      %v1383 = vpop.permute.xlu0 %1382
      %v1384 = vsel %vm1377, %v1381, %v1383
      %v1385 = vsel %vm1377, %v1383, %v1381
      %s1386 = scalar_lea.vmem %s3, 32
      %v1387 = vld [vmem:[%s1386] sm:$0xf]
      %v1388 = vpack.c.bf16 %v1378, %v1378
      %v1389 = vpack.c.bf16 %v1379, %v1379
      %s1390 = scalar_lea.vmem %s4, 32
      %v1391 = vld [vmem:[%s1390] sm:$0xf]
      %v1392 = vpack.c.bf16 %v1384, %v1384
      %v1393 = vpack.c.bf16 %v1385, %v1385
      %v1395 = vsel %vm302, %v1391, 0
      %v1398 = vsel %vm306, %v1392, 0
      %v1401 = vsel %vm306, %v1393, 0
      %1403 = vmatprep.subr.bf16.mxu0 %v1401
      %1404 = vmatpush1.bf16.msra.mxu0 %v1398
      %1405 = vmatprep.subr.bf16.mxu0 0
      %1406 = vmatpush1.bf16.msra.mxu0 0
      %1407 = vmatprep.subr.bf16.mxu0 0
      %1408 = vmatpush1.bf16.msra.mxu0 0
      %1409 = vmatprep.subr.bf16.mxu0 0
      %1410 = vmatpush1.bf16.msra.mxu0 0
      %1411 = vmatprep.subr.bf16.mxu0 0
      %1412 = vmatpush1.bf16.msra.mxu0 0
      %1413 = vmatprep.subr.bf16.mxu0 0
      %1414 = vmatpush1.bf16.msra.mxu0 0
      %1415 = vmatprep.subr.bf16.mxu0 0
      %1416 = vmatpush1.bf16.msra.mxu0 0
      %1417 = vmatprep.subr.bf16.mxu0 0
      %1418 = vmatpush1.bf16.msra.mxu0 0
      %1419 = vmatprep.subr.bf16.mxu0 0
      %1420 = vmatpush1.bf16.msra.mxu0 0
      %1421 = vmatprep.subr.bf16.mxu0 0
      %1422 = vmatpush1.bf16.msra.mxu0 0
      %1423 = vmatprep.subr.bf16.mxu0 0
      %1424 = vmatpush1.bf16.msra.mxu0 0
      %1425 = vmatprep.subr.bf16.mxu0 0
      %1426 = vmatpush1.bf16.msra.mxu0 0
      %1427 = vmatprep.subr.bf16.mxu0 0
      %1428 = vmatpush1.bf16.msra.mxu0 0
      %1429 = vmatprep.subr.bf16.mxu0 0
      %1430 = vmatpush1.bf16.msra.mxu0 0
      %1431 = vmatprep.subr.bf16.mxu0 0
      %1432 = vmatpush1.bf16.msra.mxu0 0
      %1433 = vmatprep.subr.bf16.mxu0 0
      %1434 = vmatpush1.bf16.msra.mxu0 0
      %1435 = vmatprep.mubr.bf16.mxu0 0
      %1436 = vmatmul.mubr.bf16.gmra.mrb[0].mxu0 %v1395
      %v1437 = vpop.f32.mrb[0].mxu0
      %v1438 = vadd.f32 0.0, %v1437
      %v1439 = vpop.f32.mrb[0].mxu0
      %v1440 = vadd.f32 0.0, %v1439
      %v1441 = vpop.f32.mrb[0].mxu0
      %v1442 = vpop.f32.mrb[0].mxu0
      %1443 = vdwg.mxu0
      %v1445 = vsel %vm302, %v1387, 0
      %v1448 = vsel %vm306, %v1388, 0
      %v1451 = vsel %vm306, %v1389, 0
      %1453 = vmatprep.subr.bf16.mxu0 %v1451
      %1454 = vmatpush1.bf16.msra.mxu0 %v1448
      %1455 = vmatprep.subr.bf16.mxu0 0
      %1456 = vmatpush1.bf16.msra.mxu0 0
      %1457 = vmatprep.subr.bf16.mxu0 0
      %1458 = vmatpush1.bf16.msra.mxu0 0
      %1459 = vmatprep.subr.bf16.mxu0 0
      %1460 = vmatpush1.bf16.msra.mxu0 0
      %1461 = vmatprep.subr.bf16.mxu0 0
      %1462 = vmatpush1.bf16.msra.mxu0 0
      %1463 = vmatprep.subr.bf16.mxu0 0
      %1464 = vmatpush1.bf16.msra.mxu0 0
      %1465 = vmatprep.subr.bf16.mxu0 0
      %1466 = vmatpush1.bf16.msra.mxu0 0
      %1467 = vmatprep.subr.bf16.mxu0 0
      %1468 = vmatpush1.bf16.msra.mxu0 0
      %1469 = vmatprep.subr.bf16.mxu0 0
      %1470 = vmatpush1.bf16.msra.mxu0 0
      %1471 = vmatprep.subr.bf16.mxu0 0
      %1472 = vmatpush1.bf16.msra.mxu0 0
      %1473 = vmatprep.subr.bf16.mxu0 0
      %1474 = vmatpush1.bf16.msra.mxu0 0
      %1475 = vmatprep.subr.bf16.mxu0 0
      %1476 = vmatpush1.bf16.msra.mxu0 0
      %1477 = vmatprep.subr.bf16.mxu0 0
      %1478 = vmatpush1.bf16.msra.mxu0 0
      %1479 = vmatprep.subr.bf16.mxu0 0
      %1480 = vmatpush1.bf16.msra.mxu0 0
      %1481 = vmatprep.subr.bf16.mxu0 0
      %1482 = vmatpush1.bf16.msra.mxu0 0
      %1483 = vmatprep.subr.bf16.mxu0 0
      %1484 = vmatpush1.bf16.msra.mxu0 0
      %1485 = vmatprep.mubr.bf16.mxu0 0
      %1486 = vmatmul.mubr.bf16.gmra.mrb[0].mxu0 %v1445
      %v1487 = vpop.f32.mrb[0].mxu0
      %v1488 = vadd.f32 %v1438, %v1487
      %v1489 = vpop.f32.mrb[0].mxu0
      %v1490 = vadd.f32 %v1440, %v1489
      %v1491 = vpop.f32.mrb[0].mxu0
      %v1492 = vpop.f32.mrb[0].mxu0
      %1493 = vdwg.mxu0
      %s1494 = scalar_lea.vmem %s0, 16
      %v1495 = vld [vmem:[%s1494] sm:$0x3]
      %v1497 = vlaneseq
      %v1498 = vshrl.u32 %v1497, 7
      %v1499 = vsub.s32 0, %v1498
      %v1500 = vrot.slane %v1495, %v1499
      %v1501 = vlaneseq
      %v1502 = vshrl.u32 %v1501, 7
      %v1503 = vsub.s32 1, %v1502
      %v1504 = vrot.slane %v1495, %v1503
      %v1507 = vmul.f32 %v1488, %v1500
      %v1508 = vmul.f32 %v1490, %v1504
      %v1509 = vadd.f32 %v1371, %v1507
      %v1510 = vadd.f32 %v1372, %v1508
      %v1511 = vld [vmem:[%s5] sm:$0xff]
      %1513 = vset.pattern.permute.xlu0 0
      %1514 = vperm.xlu0 %1513, %v1511
      %v1515 = vpop.permute.xlu0 %1514
      %v1517 = vadd.f32 %v1509, %v1515
      %v1518 = vadd.f32 %v1510, %v1515
      %1519 = vst [vmem:[%s271] sm:$0xff] %v1517
      %1520 = vst [vmem:[%s271 + $0x8] sm:$0xff] %v1518
      %p1521 = scmp.lt.s32.totalorder %s17, 1
      %s1522 = scalar_select %p1521, %s17, 1
      %s1523 = smul.addr %s1522, 2
      %s1524 = smul.addr %s1523, 8
      %s1525 = scalar_lea.vmem %s6, %s1524
      // Predicated region
      $region45: #{conv_layer_forward.3} parent=43 // pred_check
        %p1526 = pneg %p171
      $region46: #{conv_layer_forward.3} parent=43 // pred_check_branch
        %1528 = sbr.rel (%p1526) target = $region48
      $region47: #{conv_layer_forward.3} parent=43 // pred_region
        _
      $region48: #{conv_layer_forward.3} parent=43 // pred_fallthru
        _
    $region44: #{conv_layer_forward.3} parent=5 // pred_fallthru
      _
    %p1529 = scmp.le.s32.totalorder 2, %s12
    // Predicated region
    $region49: #{conv_layer_forward.3} parent=5 // pred_check
      %p1530 = pneg %p1529
    $region50: #{conv_layer_forward.3} parent=5 // pred_check_branch
      %1532 = sbr.rel (%p1530) target = $region52
    $region51: #{conv_layer_forward.3} parent=5 // pred_region
      %s1533 = ssub.s32 %s12, 2
      // Predicated region
      $region53: #{conv_layer_forward.3} parent=51 // pred_check
        %p1534 = pneg %p177
      $region54: #{conv_layer_forward.3} parent=51 // pred_check_branch
        %1536 = sbr.rel (%p1534) target = $region56
      $region55: #{conv_layer_forward.3} parent=51 // pred_region
        %p1537 = scmp.lt.s32.totalorder %s18, 1
        %s1538 = scalar_select %p1537, %s18, 1
        %s1539 = smul.addr %s1538, 2
        %s1540 = smul.addr %s1539, 8
        %s1541 = scalar_lea.vmem %s6, %s1540
      $region56: #{conv_layer_forward.3} parent=51 // pred_fallthru
        _
    $region52: #{conv_layer_forward.3} parent=5 // pred_fallthru
      _
  $region6: #{conv_layer_forward.3} parent=0 // loop_footer
    %s16 = sadd.s32 1, %s12
  $region7: #{conv_layer_forward.3} parent=0 // loop_footer_branch
    %11 = sbr.rel target = $region3
  $region8: #{conv_layer_forward.3} parent=0 // loop_exit
    _

</llo_original>
